<compile_context>
chip_gen: v7x
topology: tpu7x:2x2x1
jax: 0.10.0
libtpu: 0.0.40
codegen_flags: <defaults>
</compile_context>

<pallas_src>
import functools

import jax
import jax.numpy as jnp
from jax import lax
from jax.experimental import pallas as pl
from jax.experimental.pallas import tpu as pltpu

HIDDEN = 256
LN_EPS = 1e-5  # PyTorch nn.LayerNorm default


def _round_up(n, m):
    return ((n + m - 1) // m) * m


def _layernorm(h, gamma, beta):
    # Single-pass LayerNorm: both reductions (E[h], E[h^2]) are independent, so
    # they issue back-to-back on the XLU while the MXU works on another
    # sub-tile. f32 throughout; values after a Linear are well scaled, and var
    # is clamped >= 0 to guard against cancellation.
    mu = jnp.mean(h, axis=-1, keepdims=True)
    ms = jnp.mean(h * h, axis=-1, keepdims=True)
    var = jnp.maximum(ms - mu * mu, 0.0)
    return (h - mu) * lax.rsqrt(var + LN_EPS) * gamma + beta


def ppo_kernel(
    x_ref,
    w1_ref, b1_ref, g1_ref, be1_ref,
    w2_ref, b2_ref, g2_ref, be2_ref,
    w3_ref, b3_ref,
    wh_ref, bh_ref,
    head_ref,
    *, num_subtiles, sub_rows,
):
    wdt = w1_ref.dtype  # f32 or bf16; accumulation is always f32

    # Hoist weight/bias loads out of the sub-tile loop (VMEM-resident anyway).
    w1 = w1_ref[...]; b1 = b1_ref[...]; g1 = g1_ref[...]; be1 = be1_ref[...]
    w2 = w2_ref[...]; b2 = b2_ref[...]; g2 = g2_ref[...]; be2 = be2_ref[...]
    w3 = w3_ref[...]; b3 = b3_ref[...]
    wh = wh_ref[...]; bh = bh_ref[...]

    # Two independent batch sub-tiles per grid step: the LN/ReLU (VPU/XLU)
    # epilogue of one overlaps the next matmul (MXU) of the other.
    for s in range(num_subtiles):
        r0 = s * sub_rows  # static offset, multiple of 8
        x = x_ref[pl.ds(r0, sub_rows), :]  # already pre-cast to wdt in wrapper

        # shared[0..2]: Linear -> LayerNorm -> ReLU
        h = jnp.dot(x, w1, preferred_element_type=jnp.float32) + b1
        h = jnp.maximum(_layernorm(h, g1, be1), 0.0)

        # shared[3..5]: Linear -> LayerNorm -> ReLU
        h = jnp.dot(h.astype(wdt), w2, preferred_element_type=jnp.float32) + b2
        h = jnp.maximum(_layernorm(h, g2, be2), 0.0)

        # shared[6..7]: Linear -> ReLU
        h = jnp.dot(h.astype(wdt), w3, preferred_element_type=jnp.float32) + b3
        h = jnp.maximum(h, 0.0)

        # Fused heads [mean | value | zero-pad]: one lane-dense 128-wide matmul
        # plus one unmasked 128-lane store.
        head = jnp.dot(h.astype(wdt), wh, preferred_element_type=jnp.float32) + bh
        head_ref[pl.ds(r0, sub_rows), :] = head.astype(head_ref.dtype)


def prepare_params(params, weight_dtype=jnp.bfloat16):
    """One-time parameter prep (do NOT call per forward step).

    Builds the fused lane-padded head [mean | value | 0], zero-pads w1's input
    dim to a multiple of 128, casts matmul weights to `weight_dtype`
    (bf16 by default: bf16-native MXU on v5e/v6e/v7x, f32 accumulation in the
    kernel), and precomputes action_std = exp(logstd).
    """
    wdt = jnp.float32 if weight_dtype is None else weight_dtype
    obs_dim = params["w1"].shape[0]
    act_dim = params["wm"].shape[1]
    obs_pad = _round_up(obs_dim, 128)
    head_n = _round_up(act_dim + 1, 128)

    w1 = jnp.zeros((obs_pad, HIDDEN), jnp.float32).at[:obs_dim].set(params["w1"])
    wh = jnp.zeros((HIDDEN, head_n), jnp.float32)
    wh = wh.at[:, :act_dim].set(params["wm"]).at[:, act_dim].set(params["wv"][:, 0])
    bh = jnp.zeros((1, head_n), jnp.float32)
    bh = bh.at[:, :act_dim].set(params["bm"]).at[:, act_dim].set(params["bv"][:, 0])

    return {
        "w1": w1.astype(wdt), "b1": params["b1"],
        "g1": params["g1"], "be1": params["be1"],
        "w2": params["w2"].astype(wdt), "b2": params["b2"],
        "g2": params["g2"], "be2": params["be2"],
        "w3": params["w3"].astype(wdt), "b3": params["b3"],
        "wh": wh.astype(wdt), "bh": bh,
        "std": jnp.exp(params["logstd"]),  # batch-independent
    }


def _choose_tile_b(batch, tile_b):
    """Round tile_b to a hardware-friendly size and guarantee >= 2 grid steps
    whenever the batch allows (so v7x's second TensorCore gets work)."""
    b8 = _round_up(max(batch, 1), 8)
    tile_b = max(8, _round_up(int(tile_b), 8))
    two_way = _round_up((b8 + 1) // 2, 8)       # tile size giving a 2-step grid
    tile_b = min(tile_b, max(two_way, 8))
    if tile_b >= 128:                            # large tiles: multiple of 128
        tile_b = (tile_b // 128) * 128
    return tile_b


def _vmem_limit_bytes(tile_b, obs_pad, head_n, x_bytes, w_bytes):
    x_tile = tile_b * obs_pad * x_bytes
    out_tile = tile_b * head_n * 4
    weights = (obs_pad * HIDDEN + 2 * HIDDEN * HIDDEN + HIDDEN * head_n) * w_bytes
    biases = (7 * HIDDEN + head_n) * 4
    interm = 8 * tile_b * HIDDEN * 4            # live f32 activations/temporaries
    total = 2 * (x_tile + out_tile + weights + biases) + interm
    limit = int(total * 1.25) + (2 << 20)
    return max(32 << 20, min(limit, 96 << 20))


def ppo_forward(x, p, *, tile_b=2048):
    """Forward pass. `p` must come from prepare_params().

    Returns (action_mean [B, act_dim], action_std [B, act_dim], value [B, 1]).
    tile_b: batch tile; default 2048 amortizes the ~0.35 us/step pipeline
    overhead on all generations (use ~1024 if VMEM-constrained on v5e).
    """
    B, obs_dim = x.shape
    obs_pad = p["w1"].shape[0]
    head_n = p["wh"].shape[1]
    act_dim = p["std"].shape[-1]
    wdt = p["w1"].dtype

    # Pre-cast x to the weight dtype (halves DMA bytes for bf16, no in-kernel
    # cast) and zero-pad obs_dim to a lane-dense multiple of 128.
    x = x.astype(wdt)
    if obs_pad != obs_dim:
        x = jnp.pad(x, ((0, 0), (0, obs_pad - obs_dim)))

    tile_b = _choose_tile_b(B, tile_b)
    b_pad = _round_up(B, tile_b)
    if b_pad != B:
        # Padded rows just see the biases through LN (finite) and are sliced off.
        x = jnp.pad(x, ((0, b_pad - B), (0, 0)))
    grid = (b_pad // tile_b,)

    num_sub = 2 if (tile_b % 16 == 0) else 1
    sub_rows = tile_b // num_sub

    def full_spec(shape):
        zeros = (0,) * len(shape)
        return pl.BlockSpec(shape, lambda i: zeros)

    in_specs = [
        pl.BlockSpec((tile_b, obs_pad), lambda i: (i, 0)),       # x
        full_spec((obs_pad, HIDDEN)), full_spec((1, HIDDEN)),    # w1, b1
        full_spec((1, HIDDEN)), full_spec((1, HIDDEN)),          # g1, be1
        full_spec((HIDDEN, HIDDEN)), full_spec((1, HIDDEN)),     # w2, b2
        full_spec((1, HIDDEN)), full_spec((1, HIDDEN)),          # g2, be2
        full_spec((HIDDEN, HIDDEN)), full_spec((1, HIDDEN)),     # w3, b3
        full_spec((HIDDEN, head_n)), full_spec((1, head_n)),     # wh, bh
    ]
    out_specs = pl.BlockSpec((tile_b, head_n), lambda i: (i, 0))
    # TODO(synk): if profiling shows the bf16 path is HBM-bound on v6e, emit the
    # head slab in bf16 and cast back outside to halve output traffic.
    out_shape = jax.ShapeDtypeStruct((b_pad, head_n), jnp.float32)

    vmem_limit = _vmem_limit_bytes(
        tile_b, obs_pad, head_n,
        jnp.dtype(wdt).itemsize, jnp.dtype(wdt).itemsize,
    )

    head = pl.pallas_call(
        functools.partial(ppo_kernel, num_subtiles=num_sub, sub_rows=sub_rows),
        out_shape=out_shape,
        grid_spec=pltpu.PrefetchScalarGridSpec(
            num_scalar_prefetch=0,
            grid=grid,
            in_specs=in_specs,
            out_specs=out_specs,
        ),
        compiler_params=pltpu.CompilerParams(
            dimension_semantics=("parallel",),
            vmem_limit_bytes=vmem_limit,
        ),
    )(
        x,
        p["w1"], p["b1"], p["g1"], p["be1"],
        p["w2"], p["b2"], p["g2"], p["be2"],
        p["w3"], p["b3"],
        p["wh"], p["bh"],
    )

    mean = head[:B, :act_dim]
    value = head[:B, act_dim:act_dim + 1]
    std = jnp.broadcast_to(p["std"], (B, act_dim))
    return mean, std, value


def init_params(key, obs_dim, act_dim):
    """Deterministic init mimicking PyTorch nn.Linear default (U(-1/sqrt(fan_in), ...))."""
    keys = jax.random.split(key, 10)

    def linear(kw, kb, fan_in, fan_out):
        bound = 1.0 / jnp.sqrt(float(fan_in))
        w = jax.random.uniform(kw, (fan_in, fan_out), jnp.float32, -bound, bound)
        b = jax.random.uniform(kb, (1, fan_out), jnp.float32, -bound, bound)
        return w, b

    w1, b1 = linear(keys[0], keys[1], obs_dim, HIDDEN)
    w2, b2 = linear(keys[2], keys[3], HIDDEN, HIDDEN)
    w3, b3 = linear(keys[4], keys[5], HIDDEN, HIDDEN)
    wm, bm = linear(keys[6], keys[7], HIDDEN, act_dim)
    wv, bv = linear(keys[8], keys[9], HIDDEN, 1)

    return {
        "w1": w1, "b1": b1,
        "g1": jnp.ones((1, HIDDEN), jnp.float32), "be1": jnp.zeros((1, HIDDEN), jnp.float32),
        "w2": w2, "b2": b2,
        "g2": jnp.ones((1, HIDDEN), jnp.float32), "be2": jnp.zeros((1, HIDDEN), jnp.float32),
        "w3": w3, "b3": b3,
        "wm": wm, "bm": bm,
        "wv": wv, "bv": bv,
        "logstd": jnp.zeros((1, act_dim), jnp.float32),  # nn.Parameter(torch.zeros(act_dim))
    }


def ppo_reference(x, p):
    """Pure-JAX reference of the PyTorch forward."""
    def ln(h, g, b):
        mu = jnp.mean(h, -1, keepdims=True)
        var = jnp.mean((h - mu) ** 2, -1, keepdims=True)
        return (h - mu) / jnp.sqrt(var + LN_EPS) * g + b

    h = jnp.maximum(ln(x @ p["w1"] + p["b1"], p["g1"], p["be1"]), 0.0)
    h = jnp.maximum(ln(h @ p["w2"] + p["b2"], p["g2"], p["be2"]), 0.0)
    h = jnp.maximum(h @ p["w3"] + p["b3"], 0.0)
    mean = h @ p["wm"] + p["bm"]
    std = jnp.broadcast_to(jnp.exp(p["logstd"]), mean.shape)
    val = h @ p["wv"] + p["bv"]
    return mean, std, val


if __name__ == "__main__":
    # TODO(synk): torch.distributions.Normal has no Pallas equivalent; we return
    # (action_mean, action_std) tensors, which fully determine the distribution.
    B, OBS_DIM, ACT_DIM = 32, 32, 8

    key = jax.random.PRNGKey(0)
    kx, kp = jax.random.split(key)
    x = jax.random.normal(kx, (B, OBS_DIM), jnp.float32)
    params = init_params(kp, OBS_DIM, ACT_DIM)

    ref_mean, ref_std, ref_val = ppo_reference(x, params)

    # 1) Default path: bf16 weights/input, f32 accumulation. One-time prep,
    #    tile_b auto-capped so the small demo batch still yields a 2-step grid.
    p_bf16 = prepare_params(params)  # bf16 by default
    mean, std, value = jax.block_until_ready(ppo_forward(x, p_bf16))
    assert mean.shape == (B, ACT_DIM) and std.shape == (B, ACT_DIM) and value.shape == (B, 1)
    assert jnp.all(jnp.isfinite(mean)) and jnp.all(jnp.isfinite(value))
    assert jnp.allclose(mean, ref_mean, atol=5e-2, rtol=5e-2)
    assert jnp.allclose(std, ref_std, atol=1e-6)
    assert jnp.allclose(value, ref_val, atol=5e-2, rtol=5e-2)

    # 2) f32 path, tight tolerance (single-pass LayerNorm vs two-pass reference).
    p_f32 = prepare_params(params, weight_dtype=None)
    mean_f, std_f, value_f = jax.block_until_ready(ppo_forward(x, p_f32))
    assert jnp.allclose(mean_f, ref_mean, atol=1e-4, rtol=1e-4)
    assert jnp.allclose(std_f, ref_std, atol=1e-6)
    assert jnp.allclose(value_f, ref_val, atol=1e-4, rtol=1e-4)

    # 3) Explicit small tile (grid of 4, single sub-tile path), f32 weights.
    mean_t, std_t, value_t = jax.block_until_ready(ppo_forward(x, p_f32, tile_b=8))
    assert jnp.allclose(mean_t, ref_mean, atol=1e-4, rtol=1e-4)
    assert jnp.allclose(value_t, ref_val, atol=1e-4, rtol=1e-4)

    print("KERNEL_OK")
</pallas_src>

<mosaic_0001>
module attributes {stable_mosaic.version = 11 : i64} {
  func.func @ppo_kernel(%arg0: i32, %arg1: memref<16x128xbf16, #tpu.memory_space<vmem>>, %arg2: memref<128x256xbf16, #tpu.memory_space<vmem>>, %arg3: memref<1x256xf32, #tpu.memory_space<vmem>>, %arg4: memref<1x256xf32, #tpu.memory_space<vmem>>, %arg5: memref<1x256xf32, #tpu.memory_space<vmem>>, %arg6: memref<256x256xbf16, #tpu.memory_space<vmem>>, %arg7: memref<1x256xf32, #tpu.memory_space<vmem>>, %arg8: memref<1x256xf32, #tpu.memory_space<vmem>>, %arg9: memref<1x256xf32, #tpu.memory_space<vmem>>, %arg10: memref<256x256xbf16, #tpu.memory_space<vmem>>, %arg11: memref<1x256xf32, #tpu.memory_space<vmem>>, %arg12: memref<256x128xbf16, #tpu.memory_space<vmem>>, %arg13: memref<1x128xf32, #tpu.memory_space<vmem>>, %arg14: memref<16x128xf32, #tpu.memory_space<vmem>>) attributes {dimension_semantics = [#tpu.dimension_semantics<parallel>], iteration_bounds = array<i64: 2>, scalar_prefetch = 0 : i64, scratch_operands = 0 : i64, tpu.core_type = #tpu.core_type<tc>, window_params = [{transform_indices = @transform_0, window_bounds = array<i64: 16, 128>}, {pipeline_mode = #tpu.pipeline_mode<synchronous>, transform_indices = @transform_1, window_bounds = array<i64: 128, 256>}, {pipeline_mode = #tpu.pipeline_mode<synchronous>, transform_indices = @transform_2, window_bounds = array<i64: 1, 256>}, {pipeline_mode = #tpu.pipeline_mode<synchronous>, transform_indices = @transform_3, window_bounds = array<i64: 1, 256>}, {pipeline_mode = #tpu.pipeline_mode<synchronous>, transform_indices = @transform_4, window_bounds = array<i64: 1, 256>}, {pipeline_mode = #tpu.pipeline_mode<synchronous>, transform_indices = @transform_5, window_bounds = array<i64: 256, 256>}, {pipeline_mode = #tpu.pipeline_mode<synchronous>, transform_indices = @transform_6, window_bounds = array<i64: 1, 256>}, {pipeline_mode = #tpu.pipeline_mode<synchronous>, transform_indices = @transform_7, window_bounds = array<i64: 1, 256>}, {pipeline_mode = #tpu.pipeline_mode<synchronous>, transform_indices = @transform_8, window_bounds = array<i64: 1, 256>}, {pipeline_mode = #tpu.pipeline_mode<synchronous>, transform_indices = @transform_9, window_bounds = array<i64: 256, 256>}, {pipeline_mode = #tpu.pipeline_mode<synchronous>, transform_indices = @transform_10, window_bounds = array<i64: 1, 256>}, {pipeline_mode = #tpu.pipeline_mode<synchronous>, transform_indices = @transform_11, window_bounds = array<i64: 256, 128>}, {pipeline_mode = #tpu.pipeline_mode<synchronous>, transform_indices = @transform_12, window_bounds = array<i64: 1, 128>}, {transform_indices = @transform_13, window_bounds = array<i64: 16, 128>}]} {
    %c0 = arith.constant 0 : index
    %c0_0 = arith.constant 0 : index
    %0 = vector.load %arg2[%c0, %c0_0] : memref<128x256xbf16, #tpu.memory_space<vmem>>, vector<128x256xbf16>
    %c0_1 = arith.constant 0 : index
    %c0_2 = arith.constant 0 : index
    %1 = vector.load %arg3[%c0_1, %c0_2] : memref<1x256xf32, #tpu.memory_space<vmem>>, vector<1x256xf32>
    %c0_3 = arith.constant 0 : index
    %c0_4 = arith.constant 0 : index
    %2 = vector.load %arg4[%c0_3, %c0_4] : memref<1x256xf32, #tpu.memory_space<vmem>>, vector<1x256xf32>
    %c0_5 = arith.constant 0 : index
    %c0_6 = arith.constant 0 : index
    %3 = vector.load %arg5[%c0_5, %c0_6] : memref<1x256xf32, #tpu.memory_space<vmem>>, vector<1x256xf32>
    %c0_7 = arith.constant 0 : index
    %c0_8 = arith.constant 0 : index
    %4 = vector.load %arg6[%c0_7, %c0_8] : memref<256x256xbf16, #tpu.memory_space<vmem>>, vector<256x256xbf16>
    %c0_9 = arith.constant 0 : index
    %c0_10 = arith.constant 0 : index
    %5 = vector.load %arg7[%c0_9, %c0_10] : memref<1x256xf32, #tpu.memory_space<vmem>>, vector<1x256xf32>
    %c0_11 = arith.constant 0 : index
    %c0_12 = arith.constant 0 : index
    %6 = vector.load %arg8[%c0_11, %c0_12] : memref<1x256xf32, #tpu.memory_space<vmem>>, vector<1x256xf32>
    %c0_13 = arith.constant 0 : index
    %c0_14 = arith.constant 0 : index
    %7 = vector.load %arg9[%c0_13, %c0_14] : memref<1x256xf32, #tpu.memory_space<vmem>>, vector<1x256xf32>
    %c0_15 = arith.constant 0 : index
    %c0_16 = arith.constant 0 : index
    %8 = vector.load %arg10[%c0_15, %c0_16] : memref<256x256xbf16, #tpu.memory_space<vmem>>, vector<256x256xbf16>
    %c0_17 = arith.constant 0 : index
    %c0_18 = arith.constant 0 : index
    %9 = vector.load %arg11[%c0_17, %c0_18] : memref<1x256xf32, #tpu.memory_space<vmem>>, vector<1x256xf32>
    %c0_19 = arith.constant 0 : index
    %c0_20 = arith.constant 0 : index
    %10 = vector.load %arg12[%c0_19, %c0_20] : memref<256x128xbf16, #tpu.memory_space<vmem>>, vector<256x128xbf16>
    %c0_21 = arith.constant 0 : index
    %c0_22 = arith.constant 0 : index
    %11 = vector.load %arg13[%c0_21, %c0_22] : memref<1x128xf32, #tpu.memory_space<vmem>>, vector<1x128xf32>
    %c0_23 = arith.constant 0 : index
    %c0_24 = arith.constant 0 : index
    %12 = vector.load %arg1[%c0_23, %c0_24] : memref<16x128xbf16, #tpu.memory_space<vmem>>, vector<8x128xbf16>
    %cst = arith.constant dense<0.000000e+00> : vector<8x256xf32>
    %13 = tpu.matmul %12, %0, %cst {dimension_numbers = #tpu.dot_dimension_numbers<[1], [0], [0], [1], [0, 0, 1, 1], [], []>} : vector<8x128xbf16>, vector<128x256xbf16>, vector<8x256xf32> -> vector<8x256xf32>
    %14 = vector.broadcast %1 : vector<1x256xf32> to vector<8x256xf32>
    %15 = arith.addf %13, %14 : vector<8x256xf32>
    %cst_25 = arith.constant dense<0.000000e+00> : vector<8xf32>
    %16 = vector.multi_reduction <add>, %15, %cst_25 [1] : vector<8x256xf32> to vector<8xf32>
    %17 = vector.shape_cast %16 : vector<8xf32> to vector<8x1xf32>
    %cst_26 = arith.constant 2.560000e+02 : f32
    %18 = vector.broadcast %cst_26 : f32 to vector<8x1xf32>
    %19 = arith.divf %17, %18 : vector<8x1xf32>
    %20 = arith.mulf %15, %15 : vector<8x256xf32>
    %cst_27 = arith.constant dense<0.000000e+00> : vector<8xf32>
    %21 = vector.multi_reduction <add>, %20, %cst_27 [1] : vector<8x256xf32> to vector<8xf32>
    %22 = vector.shape_cast %21 : vector<8xf32> to vector<8x1xf32>
    %cst_28 = arith.constant 2.560000e+02 : f32
    %23 = vector.broadcast %cst_28 : f32 to vector<8x1xf32>
    %24 = arith.divf %22, %23 : vector<8x1xf32>
    %25 = arith.mulf %19, %19 : vector<8x1xf32>
    %26 = arith.subf %24, %25 : vector<8x1xf32>
    %cst_29 = arith.constant 0.000000e+00 : f32
    %27 = vector.broadcast %cst_29 : f32 to vector<8x1xf32>
    %28 = arith.maximumf %26, %27 : vector<8x1xf32>
    %29 = vector.broadcast %19 : vector<8x1xf32> to vector<8x256xf32>
    %30 = arith.subf %15, %29 : vector<8x256xf32>
    %cst_30 = arith.constant 9.99999974E-6 : f32
    %31 = vector.broadcast %cst_30 : f32 to vector<8x1xf32>
    %32 = arith.addf %28, %31 : vector<8x1xf32>
    %33 = math.rsqrt %32 : vector<8x1xf32>
    %34 = vector.broadcast %33 : vector<8x1xf32> to vector<8x256xf32>
    %35 = arith.mulf %30, %34 : vector<8x256xf32>
    %36 = vector.broadcast %2 : vector<1x256xf32> to vector<8x256xf32>
    %37 = arith.mulf %35, %36 : vector<8x256xf32>
    %38 = vector.broadcast %3 : vector<1x256xf32> to vector<8x256xf32>
    %39 = arith.addf %37, %38 : vector<8x256xf32>
    %cst_31 = arith.constant 0.000000e+00 : f32
    %40 = vector.broadcast %cst_31 : f32 to vector<8x256xf32>
    %41 = arith.maximumf %39, %40 : vector<8x256xf32>
    %42 = arith.truncf %41 : vector<8x256xf32> to vector<8x256xbf16>
    %cst_32 = arith.constant dense<0.000000e+00> : vector<8x256xf32>
    %43 = tpu.matmul %42, %4, %cst_32 {dimension_numbers = #tpu.dot_dimension_numbers<[1], [0], [0], [1], [0, 0, 1, 1], [], []>} : vector<8x256xbf16>, vector<256x256xbf16>, vector<8x256xf32> -> vector<8x256xf32>
    %44 = vector.broadcast %5 : vector<1x256xf32> to vector<8x256xf32>
    %45 = arith.addf %43, %44 : vector<8x256xf32>
    %cst_33 = arith.constant dense<0.000000e+00> : vector<8xf32>
    %46 = vector.multi_reduction <add>, %45, %cst_33 [1] : vector<8x256xf32> to vector<8xf32>
    %47 = vector.shape_cast %46 : vector<8xf32> to vector<8x1xf32>
    %cst_34 = arith.constant 2.560000e+02 : f32
    %48 = vector.broadcast %cst_34 : f32 to vector<8x1xf32>
    %49 = arith.divf %47, %48 : vector<8x1xf32>
    %50 = arith.mulf %45, %45 : vector<8x256xf32>
    %cst_35 = arith.constant dense<0.000000e+00> : vector<8xf32>
    %51 = vector.multi_reduction <add>, %50, %cst_35 [1] : vector<8x256xf32> to vector<8xf32>
    %52 = vector.shape_cast %51 : vector<8xf32> to vector<8x1xf32>
    %cst_36 = arith.constant 2.560000e+02 : f32
    %53 = vector.broadcast %cst_36 : f32 to vector<8x1xf32>
    %54 = arith.divf %52, %53 : vector<8x1xf32>
    %55 = arith.mulf %49, %49 : vector<8x1xf32>
    %56 = arith.subf %54, %55 : vector<8x1xf32>
    %cst_37 = arith.constant 0.000000e+00 : f32
    %57 = vector.broadcast %cst_37 : f32 to vector<8x1xf32>
    %58 = arith.maximumf %56, %57 : vector<8x1xf32>
    %59 = vector.broadcast %49 : vector<8x1xf32> to vector<8x256xf32>
    %60 = arith.subf %45, %59 : vector<8x256xf32>
    %cst_38 = arith.constant 9.99999974E-6 : f32
    %61 = vector.broadcast %cst_38 : f32 to vector<8x1xf32>
    %62 = arith.addf %58, %61 : vector<8x1xf32>
    %63 = math.rsqrt %62 : vector<8x1xf32>
    %64 = vector.broadcast %63 : vector<8x1xf32> to vector<8x256xf32>
    %65 = arith.mulf %60, %64 : vector<8x256xf32>
    %66 = vector.broadcast %6 : vector<1x256xf32> to vector<8x256xf32>
    %67 = arith.mulf %65, %66 : vector<8x256xf32>
    %68 = vector.broadcast %7 : vector<1x256xf32> to vector<8x256xf32>
    %69 = arith.addf %67, %68 : vector<8x256xf32>
    %cst_39 = arith.constant 0.000000e+00 : f32
    %70 = vector.broadcast %cst_39 : f32 to vector<8x256xf32>
    %71 = arith.maximumf %69, %70 : vector<8x256xf32>
    %72 = arith.truncf %71 : vector<8x256xf32> to vector<8x256xbf16>
    %cst_40 = arith.constant dense<0.000000e+00> : vector<8x256xf32>
    %73 = tpu.matmul %72, %8, %cst_40 {dimension_numbers = #tpu.dot_dimension_numbers<[1], [0], [0], [1], [0, 0, 1, 1], [], []>} : vector<8x256xbf16>, vector<256x256xbf16>, vector<8x256xf32> -> vector<8x256xf32>
    %74 = vector.broadcast %9 : vector<1x256xf32> to vector<8x256xf32>
    %75 = arith.addf %73, %74 : vector<8x256xf32>
    %cst_41 = arith.constant 0.000000e+00 : f32
    %76 = vector.broadcast %cst_41 : f32 to vector<8x256xf32>
    %77 = arith.maximumf %75, %76 : vector<8x256xf32>
    %78 = arith.truncf %77 : vector<8x256xf32> to vector<8x256xbf16>
    %cst_42 = arith.constant dense<0.000000e+00> : vector<8x128xf32>
    %79 = tpu.matmul %78, %10, %cst_42 {dimension_numbers = #tpu.dot_dimension_numbers<[1], [0], [0], [1], [0, 0, 1, 1], [], []>} : vector<8x256xbf16>, vector<256x128xbf16>, vector<8x128xf32> -> vector<8x128xf32>
    %80 = vector.broadcast %11 : vector<1x128xf32> to vector<8x128xf32>
    %81 = arith.addf %79, %80 : vector<8x128xf32>
    %c0_43 = arith.constant 0 : index
    %c0_44 = arith.constant 0 : index
    %82 = vector.load %arg14[%c0_43, %c0_44] : memref<16x128xf32, #tpu.memory_space<vmem>>, vector<8x128xf32>
    tpu.vector_store %arg14[%c0_43, %c0_44], %81 {strides = array<i32>} : memref<16x128xf32, #tpu.memory_space<vmem>>, vector<8x128xf32>,
    %c8 = arith.constant 8 : index
    %c0_45 = arith.constant 0 : index
    %83 = vector.load %arg1[%c8, %c0_45] : memref<16x128xbf16, #tpu.memory_space<vmem>>, vector<8x128xbf16>
    %cst_46 = arith.constant dense<0.000000e+00> : vector<8x256xf32>
    %84 = tpu.matmul %83, %0, %cst_46 {dimension_numbers = #tpu.dot_dimension_numbers<[1], [0], [0], [1], [0, 0, 1, 1], [], []>} : vector<8x128xbf16>, vector<128x256xbf16>, vector<8x256xf32> -> vector<8x256xf32>
    %85 = vector.broadcast %1 : vector<1x256xf32> to vector<8x256xf32>
    %86 = arith.addf %84, %85 : vector<8x256xf32>
    %cst_47 = arith.constant dense<0.000000e+00> : vector<8xf32>
    %87 = vector.multi_reduction <add>, %86, %cst_47 [1] : vector<8x256xf32> to vector<8xf32>
    %88 = vector.shape_cast %87 : vector<8xf32> to vector<8x1xf32>
    %cst_48 = arith.constant 2.560000e+02 : f32
    %89 = vector.broadcast %cst_48 : f32 to vector<8x1xf32>
    %90 = arith.divf %88, %89 : vector<8x1xf32>
    %91 = arith.mulf %86, %86 : vector<8x256xf32>
    %cst_49 = arith.constant dense<0.000000e+00> : vector<8xf32>
    %92 = vector.multi_reduction <add>, %91, %cst_49 [1] : vector<8x256xf32> to vector<8xf32>
    %93 = vector.shape_cast %92 : vector<8xf32> to vector<8x1xf32>
    %cst_50 = arith.constant 2.560000e+02 : f32
    %94 = vector.broadcast %cst_50 : f32 to vector<8x1xf32>
    %95 = arith.divf %93, %94 : vector<8x1xf32>
    %96 = arith.mulf %90, %90 : vector<8x1xf32>
    %97 = arith.subf %95, %96 : vector<8x1xf32>
    %cst_51 = arith.constant 0.000000e+00 : f32
    %98 = vector.broadcast %cst_51 : f32 to vector<8x1xf32>
    %99 = arith.maximumf %97, %98 : vector<8x1xf32>
    %100 = vector.broadcast %90 : vector<8x1xf32> to vector<8x256xf32>
    %101 = arith.subf %86, %100 : vector<8x256xf32>
    %cst_52 = arith.constant 9.99999974E-6 : f32
    %102 = vector.broadcast %cst_52 : f32 to vector<8x1xf32>
    %103 = arith.addf %99, %102 : vector<8x1xf32>
    %104 = math.rsqrt %103 : vector<8x1xf32>
    %105 = vector.broadcast %104 : vector<8x1xf32> to vector<8x256xf32>
    %106 = arith.mulf %101, %105 : vector<8x256xf32>
    %107 = vector.broadcast %2 : vector<1x256xf32> to vector<8x256xf32>
    %108 = arith.mulf %106, %107 : vector<8x256xf32>
    %109 = vector.broadcast %3 : vector<1x256xf32> to vector<8x256xf32>
    %110 = arith.addf %108, %109 : vector<8x256xf32>
    %cst_53 = arith.constant 0.000000e+00 : f32
    %111 = vector.broadcast %cst_53 : f32 to vector<8x256xf32>
    %112 = arith.maximumf %110, %111 : vector<8x256xf32>
    %113 = arith.truncf %112 : vector<8x256xf32> to vector<8x256xbf16>
    %cst_54 = arith.constant dense<0.000000e+00> : vector<8x256xf32>
    %114 = tpu.matmul %113, %4, %cst_54 {dimension_numbers = #tpu.dot_dimension_numbers<[1], [0], [0], [1], [0, 0, 1, 1], [], []>} : vector<8x256xbf16>, vector<256x256xbf16>, vector<8x256xf32> -> vector<8x256xf32>
    %115 = vector.broadcast %5 : vector<1x256xf32> to vector<8x256xf32>
    %116 = arith.addf %114, %115 : vector<8x256xf32>
    %cst_55 = arith.constant dense<0.000000e+00> : vector<8xf32>
    %117 = vector.multi_reduction <add>, %116, %cst_55 [1] : vector<8x256xf32> to vector<8xf32>
    %118 = vector.shape_cast %117 : vector<8xf32> to vector<8x1xf32>
    %cst_56 = arith.constant 2.560000e+02 : f32
    %119 = vector.broadcast %cst_56 : f32 to vector<8x1xf32>
    %120 = arith.divf %118, %119 : vector<8x1xf32>
    %121 = arith.mulf %116, %116 : vector<8x256xf32>
    %cst_57 = arith.constant dense<0.000000e+00> : vector<8xf32>
    %122 = vector.multi_reduction <add>, %121, %cst_57 [1] : vector<8x256xf32> to vector<8xf32>
    %123 = vector.shape_cast %122 : vector<8xf32> to vector<8x1xf32>
    %cst_58 = arith.constant 2.560000e+02 : f32
    %124 = vector.broadcast %cst_58 : f32 to vector<8x1xf32>
    %125 = arith.divf %123, %124 : vector<8x1xf32>
    %126 = arith.mulf %120, %120 : vector<8x1xf32>
    %127 = arith.subf %125, %126 : vector<8x1xf32>
    %cst_59 = arith.constant 0.000000e+00 : f32
    %128 = vector.broadcast %cst_59 : f32 to vector<8x1xf32>
    %129 = arith.maximumf %127, %128 : vector<8x1xf32>
    %130 = vector.broadcast %120 : vector<8x1xf32> to vector<8x256xf32>
    %131 = arith.subf %116, %130 : vector<8x256xf32>
    %cst_60 = arith.constant 9.99999974E-6 : f32
    %132 = vector.broadcast %cst_60 : f32 to vector<8x1xf32>
    %133 = arith.addf %129, %132 : vector<8x1xf32>
    %134 = math.rsqrt %133 : vector<8x1xf32>
    %135 = vector.broadcast %134 : vector<8x1xf32> to vector<8x256xf32>
    %136 = arith.mulf %131, %135 : vector<8x256xf32>
    %137 = vector.broadcast %6 : vector<1x256xf32> to vector<8x256xf32>
    %138 = arith.mulf %136, %137 : vector<8x256xf32>
    %139 = vector.broadcast %7 : vector<1x256xf32> to vector<8x256xf32>
    %140 = arith.addf %138, %139 : vector<8x256xf32>
    %cst_61 = arith.constant 0.000000e+00 : f32
    %141 = vector.broadcast %cst_61 : f32 to vector<8x256xf32>
    %142 = arith.maximumf %140, %141 : vector<8x256xf32>
    %143 = arith.truncf %142 : vector<8x256xf32> to vector<8x256xbf16>
    %cst_62 = arith.constant dense<0.000000e+00> : vector<8x256xf32>
    %144 = tpu.matmul %143, %8, %cst_62 {dimension_numbers = #tpu.dot_dimension_numbers<[1], [0], [0], [1], [0, 0, 1, 1], [], []>} : vector<8x256xbf16>, vector<256x256xbf16>, vector<8x256xf32> -> vector<8x256xf32>
    %145 = vector.broadcast %9 : vector<1x256xf32> to vector<8x256xf32>
    %146 = arith.addf %144, %145 : vector<8x256xf32>
    %cst_63 = arith.constant 0.000000e+00 : f32
    %147 = vector.broadcast %cst_63 : f32 to vector<8x256xf32>
    %148 = arith.maximumf %146, %147 : vector<8x256xf32>
    %149 = arith.truncf %148 : vector<8x256xf32> to vector<8x256xbf16>
    %cst_64 = arith.constant dense<0.000000e+00> : vector<8x128xf32>
    %150 = tpu.matmul %149, %10, %cst_64 {dimension_numbers = #tpu.dot_dimension_numbers<[1], [0], [0], [1], [0, 0, 1, 1], [], []>} : vector<8x256xbf16>, vector<256x128xbf16>, vector<8x128xf32> -> vector<8x128xf32>
    %151 = vector.broadcast %11 : vector<1x128xf32> to vector<8x128xf32>
    %152 = arith.addf %150, %151 : vector<8x128xf32>
    %c8_65 = arith.constant 8 : index
    %c0_66 = arith.constant 0 : index
    %153 = vector.load %arg14[%c8_65, %c0_66] : memref<16x128xf32, #tpu.memory_space<vmem>>, vector<8x128xf32>
    tpu.vector_store %arg14[%c8_65, %c0_66], %152 {strides = array<i32>} : memref<16x128xf32, #tpu.memory_space<vmem>>, vector<8x128xf32>,
    return
  }
  func.func @transform_0(%arg0: i32) -> (i32, i32) {
    %c0_i32 = arith.constant 0 : i32
    %c0_i32_0 = arith.constant 0 : i32
    return %arg0, %c0_i32 : i32, i32
  }
  func.func @transform_1(%arg0: i32) -> (i32, i32) {
    %c0_i32 = arith.constant 0 : i32
    %c0_i32_0 = arith.constant 0 : i32
    %c0_i32_1 = arith.constant 0 : i32
    return %c0_i32, %c0_i32_0 : i32, i32
  }
  func.func @transform_2(%arg0: i32) -> (i32, i32) {
    %c0_i32 = arith.constant 0 : i32
    %c0_i32_0 = arith.constant 0 : i32
    %c0_i32_1 = arith.constant 0 : i32
    return %c0_i32, %c0_i32_0 : i32, i32
  }
  func.func @transform_3(%arg0: i32) -> (i32, i32) {
    %c0_i32 = arith.constant 0 : i32
    %c0_i32_0 = arith.constant 0 : i32
    %c0_i32_1 = arith.constant 0 : i32
    return %c0_i32, %c0_i32_0 : i32, i32
  }
  func.func @transform_4(%arg0: i32) -> (i32, i32) {
    %c0_i32 = arith.constant 0 : i32
    %c0_i32_0 = arith.constant 0 : i32
    %c0_i32_1 = arith.constant 0 : i32
    return %c0_i32, %c0_i32_0 : i32, i32
  }
  func.func @transform_5(%arg0: i32) -> (i32, i32) {
    %c0_i32 = arith.constant 0 : i32
    %c0_i32_0 = arith.constant 0 : i32
    %c0_i32_1 = arith.constant 0 : i32
    return %c0_i32, %c0_i32_0 : i32, i32
  }
  func.func @transform_6(%arg0: i32) -> (i32, i32) {
    %c0_i32 = arith.constant 0 : i32
    %c0_i32_0 = arith.constant 0 : i32
    %c0_i32_1 = arith.constant 0 : i32
    return %c0_i32, %c0_i32_0 : i32, i32
  }
  func.func @transform_7(%arg0: i32) -> (i32, i32) {
    %c0_i32 = arith.constant 0 : i32
    %c0_i32_0 = arith.constant 0 : i32
    %c0_i32_1 = arith.constant 0 : i32
    return %c0_i32, %c0_i32_0 : i32, i32
  }
  func.func @transform_8(%arg0: i32) -> (i32, i32) {
    %c0_i32 = arith.constant 0 : i32
    %c0_i32_0 = arith.constant 0 : i32
    %c0_i32_1 = arith.constant 0 : i32
    return %c0_i32, %c0_i32_0 : i32, i32
  }
  func.func @transform_9(%arg0: i32) -> (i32, i32) {
    %c0_i32 = arith.constant 0 : i32
    %c0_i32_0 = arith.constant 0 : i32
    %c0_i32_1 = arith.constant 0 : i32
    return %c0_i32, %c0_i32_0 : i32, i32
  }
  func.func @transform_10(%arg0: i32) -> (i32, i32) {
    %c0_i32 = arith.constant 0 : i32
    %c0_i32_0 = arith.constant 0 : i32
    %c0_i32_1 = arith.constant 0 : i32
    return %c0_i32, %c0_i32_0 : i32, i32
  }
  func.func @transform_11(%arg0: i32) -> (i32, i32) {
    %c0_i32 = arith.constant 0 : i32
    %c0_i32_0 = arith.constant 0 : i32
    %c0_i32_1 = arith.constant 0 : i32
    return %c0_i32, %c0_i32_0 : i32, i32
  }
  func.func @transform_12(%arg0: i32) -> (i32, i32) {
    %c0_i32 = arith.constant 0 : i32
    %c0_i32_0 = arith.constant 0 : i32
    %c0_i32_1 = arith.constant 0 : i32
    return %c0_i32, %c0_i32_0 : i32, i32
  }
  func.func @transform_13(%arg0: i32) -> (i32, i32) {
    %c0_i32 = arith.constant 0 : i32
    %c0_i32_0 = arith.constant 0 : i32
    return %arg0, %c0_i32 : i32, i32
  }
}

</mosaic_0001>

<llo_original>
// kernel: tpu_custom_call.1
$region0: #{tpu_custom_call.1}
  #allocation0 [shape = 'u32[]', space=smem, size = 0x4, offset = 0x4, fixed_abs, tag = 'smem constant byte address 0x4 - core index']
  #allocation1 [shape = 'u32[144,128]{1,0:T(1,128)}', space=vmem, size = 0x12000, scoped, tag = 'internal scratch']
  %s0 = inlined_call_operand.hbm [shape: bf16[32,128], index: 0, kind: input, shape index: {}]
  %s1 = inlined_call_operand.hbm [shape: bf16[128,256], index: 1, kind: input, shape index: {}]
  %s2 = inlined_call_operand.vmem [shape: f32[1,256], index: 2, kind: input, shape index: {}]
  %s3 = inlined_call_operand.vmem [shape: f32[1,256], index: 3, kind: input, shape index: {}]
  %s4 = inlined_call_operand.vmem [shape: f32[1,256], index: 4, kind: input, shape index: {}]
  %s5 = inlined_call_operand.hbm [shape: bf16[256,256], index: 5, kind: input, shape index: {}]
  %s6 = inlined_call_operand.vmem [shape: f32[1,256], index: 6, kind: input, shape index: {}]
  %s7 = inlined_call_operand.vmem [shape: f32[1,256], index: 7, kind: input, shape index: {}]
  %s8 = inlined_call_operand.vmem [shape: f32[1,256], index: 8, kind: input, shape index: {}]
  %s9 = inlined_call_operand.hbm [shape: bf16[256,256], index: 9, kind: input, shape index: {}]
  %s10 = inlined_call_operand.vmem [shape: f32[1,256], index: 10, kind: input, shape index: {}]
  %s11 = inlined_call_operand.hbm [shape: bf16[256,128], index: 11, kind: input, shape index: {}]
  %s12 = inlined_call_operand.vmem [shape: f32[1,128], index: 12, kind: input, shape index: {}]
  %s13 = inlined_call_operand.hbm [shape: f32[32,128], index: 13, kind: output, shape index: {}]
  %s14 = sld [smem:[#allocation0]]
  $region105: #{tpu_custom_call.1} parent=0
    _
  %s16 = ssub.s32 1, %s14
  %s17 = scalar_select 0, %s16, %s14
  $region1: #{tpu_custom_call.1} parent=0
    #allocation2 [shape = 'u8[8192]{0}', space=vmem, size = 0x2000, scoped, tag = 'input window, operand 0']
    #allocation3 [shape = 's32[2]{0}', space=sflag, size = 0x8, scoped, tag = 'scoped memory for tpu_custom_call.1']
    #allocation4 [shape = 's32[2]{0}', space=sflag, size = 0x8, scoped, tag = 'scoped memory for tpu_custom_call.1']
    #allocation5 [shape = 'u8[65536]{0}', space=vmem, size = 0x10000, scoped, tag = 'input window, operand 1, single buffered']
    #allocation6 [shape = 's32[1]{0}', space=sflag, size = 0x4, scoped, tag = 'scoped memory for tpu_custom_call.1']
    #allocation7 [shape = 'u8[131072]{0}', space=vmem, size = 0x20000, scoped, tag = 'input window, operand 5, single buffered']
    #allocation8 [shape = 'u8[131072]{0}', space=vmem, size = 0x20000, scoped, tag = 'input window, operand 9, single buffered']
    #allocation9 [shape = 's32[1]{0}', space=sflag, size = 0x4, scoped, tag = 'scoped memory for tpu_custom_call.1']
    #allocation10 [shape = 'u8[65536]{0}', space=vmem, size = 0x10000, scoped, tag = 'input window, operand 11, single buffered']
    #allocation11 [shape = 'u8[16384]{0}', space=vmem, size = 0x4000, scoped, tag = 'output window, operand 0']
    %18 = vsyncpa [#allocation3], 0
    %s19 = scalar_lea.sflag [#allocation3], 1
    %20 = vsyncpa %s19, 0
    %21 = vsyncpa [#allocation6], 0
    %22 = vsyncpa [#allocation9], 0
    %23 = vsyncpa [#allocation4], 0
    %s24 = scalar_lea.sflag [#allocation4], 1
    %25 = vsyncpa %s24, 0
    loop: start=0, step=1, limit=4
    $region2: #{tpu_custom_call.1} parent=1 // loop_pre_header
      _
    $region3: #{tpu_custom_call.1} parent=1 // loop_header
      %s27 = sphi 0, %s31
      %p28 = scmp.ge.s32.totalorder %s27, 4
      %s37 = sphi 0, %s39
      %s40 = sphi 0, %s37
      %s41 = sphi 0, %s40
      %s57 = sphi 0, %s41
      %s61 = sphi 0, %s61
      %s63 = sphi 0, %s61
      %s64 = sphi 0, %s63
      %s78 = sphi 0, %s64
      %s82 = sphi 0, %s82
      %s84 = sphi 0, %s82
      %s85 = sphi 0, %s84
      %s99 = sphi 0, %s85
      %s103 = sphi 0, %s103
      %s105 = sphi 0, %s103
      %s106 = sphi 0, %s105
      %s120 = sphi 0, %s106
      %s124 = sphi 0, %s124
      %s126 = sphi 0, %s124
      %s127 = sphi 0, %s126
      %s141 = sphi 0, %s127
      %s145 = sphi 0, %s145
      %s147 = sphi 0, %s145
      %s148 = sphi 0, %s147
      %s162 = sphi 0, %s148
      %s166 = sphi 0, %s166
      %s168 = sphi 0, %s166
      %s169 = sphi 0, %s168
      %s183 = sphi 0, %s169
      %s187 = sphi 0, %s187
      %s189 = sphi 0, %s187
      %s190 = sphi 0, %s189
      %s204 = sphi 0, %s190
      %s208 = sphi 0, %s208
      %s210 = sphi 0, %s208
      %s211 = sphi 0, %s210
      %s225 = sphi 0, %s211
      %s229 = sphi 0, %s229
      %s231 = sphi 0, %s229
      %s232 = sphi 0, %s231
      %s246 = sphi 0, %s232
      %s250 = sphi 0, %s250
      %s252 = sphi 0, %s250
      %s253 = sphi 0, %s252
      %s267 = sphi 0, %s253
      %s271 = sphi 0, %s271
      %s273 = sphi 0, %s271
      %s274 = sphi 0, %s273
      %s288 = sphi 0, %s274
      %s292 = sphi 0, %s292
      %s294 = sphi 0, %s292
      %s295 = sphi 0, %s294
      %s309 = sphi 0, %s295
      %s315 = sphi 0, %s317
      %s318 = sphi 0, %s315
      %s319 = sphi 0, %s318
      %s335 = sphi 0, %s319
    $region4: #{tpu_custom_call.1} parent=1 // loop_header_branch
      %30 = sbr.rel (%p28) target = $region8
    $region5: #{tpu_custom_call.1} parent=1 // loop_body
      %s32 = ssub.s32 %s27, 1
      %s33 = ssub.s32 %s27, 2
      %s34 = sadd.s32 %s27, 1
      %s35 = ssub.s32 %s27, %s34
      %p36 = scmp.eq.s32.totalorder %s35, 0
      %s38 = sadd.s32 %s37, 1
      %s39 = scalar_select %p36, %s37, %s38
      %p42 = pneg %p36
      %p43 = scmp.eq.s32.totalorder %s27, 1
      %p44 = por %p42, %p43
      %p45 = scmp.ne.s32.totalorder %s37, %s40
      %p46 = scmp.eq.s32.totalorder %s27, 0
      %p47 = por %p45, %p46
      %p48 = scmp.ne.s32.totalorder %s37, %s40
      %p49 = scmp.eq.s32.totalorder %s32, 1
      %p50 = por %p48, %p49
      %p51 = scmp.ne.s32.totalorder %s40, %s41
      %p52 = scmp.eq.s32.totalorder %s32, 0
      %p53 = por %p51, %p52
      %p54 = scmp.ne.s32.totalorder %s40, %s41
      %p55 = scmp.eq.s32.totalorder %s33, 1
      %p56 = por %p54, %p55
      %p58 = scmp.ne.s32.totalorder %s41, %s57
      %p59 = scmp.eq.s32.totalorder %s33, 0
      %p60 = por %p58, %p59
      %s62 = sadd.s32 %s61, 1
      %p65 = scmp.eq.s32.totalorder %s27, 1
      %p66 = scmp.ne.s32.totalorder %s61, %s63
      %p67 = scmp.eq.s32.totalorder %s27, 0
      %p68 = por %p66, %p67
      %p69 = scmp.ne.s32.totalorder %s61, %s63
      %p70 = scmp.eq.s32.totalorder %s32, 1
      %p71 = por %p69, %p70
      %p72 = scmp.ne.s32.totalorder %s63, %s64
      %p73 = scmp.eq.s32.totalorder %s32, 0
      %p74 = por %p72, %p73
      %p75 = scmp.ne.s32.totalorder %s63, %s64
      %p76 = scmp.eq.s32.totalorder %s33, 1
      %p77 = por %p75, %p76
      %p79 = scmp.ne.s32.totalorder %s64, %s78
      %p80 = scmp.eq.s32.totalorder %s33, 0
      %p81 = por %p79, %p80
      %s83 = sadd.s32 %s82, 1
      %p86 = scmp.eq.s32.totalorder %s27, 1
      %p87 = scmp.ne.s32.totalorder %s82, %s84
      %p88 = scmp.eq.s32.totalorder %s27, 0
      %p89 = por %p87, %p88
      %p90 = scmp.ne.s32.totalorder %s82, %s84
      %p91 = scmp.eq.s32.totalorder %s32, 1
      %p92 = por %p90, %p91
      %p93 = scmp.ne.s32.totalorder %s84, %s85
      %p94 = scmp.eq.s32.totalorder %s32, 0
      %p95 = por %p93, %p94
      %p96 = scmp.ne.s32.totalorder %s84, %s85
      %p97 = scmp.eq.s32.totalorder %s33, 1
      %p98 = por %p96, %p97
      %p100 = scmp.ne.s32.totalorder %s85, %s99
      %p101 = scmp.eq.s32.totalorder %s33, 0
      %p102 = por %p100, %p101
      %s104 = sadd.s32 %s103, 1
      %p107 = scmp.eq.s32.totalorder %s27, 1
      %p108 = scmp.ne.s32.totalorder %s103, %s105
      %p109 = scmp.eq.s32.totalorder %s27, 0
      %p110 = por %p108, %p109
      %p111 = scmp.ne.s32.totalorder %s103, %s105
      %p112 = scmp.eq.s32.totalorder %s32, 1
      %p113 = por %p111, %p112
      %p114 = scmp.ne.s32.totalorder %s105, %s106
      %p115 = scmp.eq.s32.totalorder %s32, 0
      %p116 = por %p114, %p115
      %p117 = scmp.ne.s32.totalorder %s105, %s106
      %p118 = scmp.eq.s32.totalorder %s33, 1
      %p119 = por %p117, %p118
      %p121 = scmp.ne.s32.totalorder %s106, %s120
      %p122 = scmp.eq.s32.totalorder %s33, 0
      %p123 = por %p121, %p122
      %s125 = sadd.s32 %s124, 1
      %p128 = scmp.eq.s32.totalorder %s27, 1
      %p129 = scmp.ne.s32.totalorder %s124, %s126
      %p130 = scmp.eq.s32.totalorder %s27, 0
      %p131 = por %p129, %p130
      %p132 = scmp.ne.s32.totalorder %s124, %s126
      %p133 = scmp.eq.s32.totalorder %s32, 1
      %p134 = por %p132, %p133
      %p135 = scmp.ne.s32.totalorder %s126, %s127
      %p136 = scmp.eq.s32.totalorder %s32, 0
      %p137 = por %p135, %p136
      %p138 = scmp.ne.s32.totalorder %s126, %s127
      %p139 = scmp.eq.s32.totalorder %s33, 1
      %p140 = por %p138, %p139
      %p142 = scmp.ne.s32.totalorder %s127, %s141
      %p143 = scmp.eq.s32.totalorder %s33, 0
      %p144 = por %p142, %p143
      %s146 = sadd.s32 %s145, 1
      %p149 = scmp.eq.s32.totalorder %s27, 1
      %p150 = scmp.ne.s32.totalorder %s145, %s147
      %p151 = scmp.eq.s32.totalorder %s27, 0
      %p152 = por %p150, %p151
      %p153 = scmp.ne.s32.totalorder %s145, %s147
      %p154 = scmp.eq.s32.totalorder %s32, 1
      %p155 = por %p153, %p154
      %p156 = scmp.ne.s32.totalorder %s147, %s148
      %p157 = scmp.eq.s32.totalorder %s32, 0
      %p158 = por %p156, %p157
      %p159 = scmp.ne.s32.totalorder %s147, %s148
      %p160 = scmp.eq.s32.totalorder %s33, 1
      %p161 = por %p159, %p160
      %p163 = scmp.ne.s32.totalorder %s148, %s162
      %p164 = scmp.eq.s32.totalorder %s33, 0
      %p165 = por %p163, %p164
      %s167 = sadd.s32 %s166, 1
      %p170 = scmp.eq.s32.totalorder %s27, 1
      %p171 = scmp.ne.s32.totalorder %s166, %s168
      %p172 = scmp.eq.s32.totalorder %s27, 0
      %p173 = por %p171, %p172
      %p174 = scmp.ne.s32.totalorder %s166, %s168
      %p175 = scmp.eq.s32.totalorder %s32, 1
      %p176 = por %p174, %p175
      %p177 = scmp.ne.s32.totalorder %s168, %s169
      %p178 = scmp.eq.s32.totalorder %s32, 0
      %p179 = por %p177, %p178
      %p180 = scmp.ne.s32.totalorder %s168, %s169
      %p181 = scmp.eq.s32.totalorder %s33, 1
      %p182 = por %p180, %p181
      %p184 = scmp.ne.s32.totalorder %s169, %s183
      %p185 = scmp.eq.s32.totalorder %s33, 0
      %p186 = por %p184, %p185
      %s188 = sadd.s32 %s187, 1
      %p191 = scmp.eq.s32.totalorder %s27, 1
      %p192 = scmp.ne.s32.totalorder %s187, %s189
      %p193 = scmp.eq.s32.totalorder %s27, 0
      %p194 = por %p192, %p193
      %p195 = scmp.ne.s32.totalorder %s187, %s189
      %p196 = scmp.eq.s32.totalorder %s32, 1
      %p197 = por %p195, %p196
      %p198 = scmp.ne.s32.totalorder %s189, %s190
      %p199 = scmp.eq.s32.totalorder %s32, 0
      %p200 = por %p198, %p199
      %p201 = scmp.ne.s32.totalorder %s189, %s190
      %p202 = scmp.eq.s32.totalorder %s33, 1
      %p203 = por %p201, %p202
      %p205 = scmp.ne.s32.totalorder %s190, %s204
      %p206 = scmp.eq.s32.totalorder %s33, 0
      %p207 = por %p205, %p206
      %s209 = sadd.s32 %s208, 1
      %p212 = scmp.eq.s32.totalorder %s27, 1
      %p213 = scmp.ne.s32.totalorder %s208, %s210
      %p214 = scmp.eq.s32.totalorder %s27, 0
      %p215 = por %p213, %p214
      %p216 = scmp.ne.s32.totalorder %s208, %s210
      %p217 = scmp.eq.s32.totalorder %s32, 1
      %p218 = por %p216, %p217
      %p219 = scmp.ne.s32.totalorder %s210, %s211
      %p220 = scmp.eq.s32.totalorder %s32, 0
      %p221 = por %p219, %p220
      %p222 = scmp.ne.s32.totalorder %s210, %s211
      %p223 = scmp.eq.s32.totalorder %s33, 1
      %p224 = por %p222, %p223
      %p226 = scmp.ne.s32.totalorder %s211, %s225
      %p227 = scmp.eq.s32.totalorder %s33, 0
      %p228 = por %p226, %p227
      %s230 = sadd.s32 %s229, 1
      %p233 = scmp.eq.s32.totalorder %s27, 1
      %p234 = scmp.ne.s32.totalorder %s229, %s231
      %p235 = scmp.eq.s32.totalorder %s27, 0
      %p236 = por %p234, %p235
      %p237 = scmp.ne.s32.totalorder %s229, %s231
      %p238 = scmp.eq.s32.totalorder %s32, 1
      %p239 = por %p237, %p238
      %p240 = scmp.ne.s32.totalorder %s231, %s232
      %p241 = scmp.eq.s32.totalorder %s32, 0
      %p242 = por %p240, %p241
      %p243 = scmp.ne.s32.totalorder %s231, %s232
      %p244 = scmp.eq.s32.totalorder %s33, 1
      %p245 = por %p243, %p244
      %p247 = scmp.ne.s32.totalorder %s232, %s246
      %p248 = scmp.eq.s32.totalorder %s33, 0
      %p249 = por %p247, %p248
      %s251 = sadd.s32 %s250, 1
      %p254 = scmp.eq.s32.totalorder %s27, 1
      %p255 = scmp.ne.s32.totalorder %s250, %s252
      %p256 = scmp.eq.s32.totalorder %s27, 0
      %p257 = por %p255, %p256
      %p258 = scmp.ne.s32.totalorder %s250, %s252
      %p259 = scmp.eq.s32.totalorder %s32, 1
      %p260 = por %p258, %p259
      %p261 = scmp.ne.s32.totalorder %s252, %s253
      %p262 = scmp.eq.s32.totalorder %s32, 0
      %p263 = por %p261, %p262
      %p264 = scmp.ne.s32.totalorder %s252, %s253
      %p265 = scmp.eq.s32.totalorder %s33, 1
      %p266 = por %p264, %p265
      %p268 = scmp.ne.s32.totalorder %s253, %s267
      %p269 = scmp.eq.s32.totalorder %s33, 0
      %p270 = por %p268, %p269
      %s272 = sadd.s32 %s271, 1
      %p275 = scmp.eq.s32.totalorder %s27, 1
      %p276 = scmp.ne.s32.totalorder %s271, %s273
      %p277 = scmp.eq.s32.totalorder %s27, 0
      %p278 = por %p276, %p277
      %p279 = scmp.ne.s32.totalorder %s271, %s273
      %p280 = scmp.eq.s32.totalorder %s32, 1
      %p281 = por %p279, %p280
      %p282 = scmp.ne.s32.totalorder %s273, %s274
      %p283 = scmp.eq.s32.totalorder %s32, 0
      %p284 = por %p282, %p283
      %p285 = scmp.ne.s32.totalorder %s273, %s274
      %p286 = scmp.eq.s32.totalorder %s33, 1
      %p287 = por %p285, %p286
      %p289 = scmp.ne.s32.totalorder %s274, %s288
      %p290 = scmp.eq.s32.totalorder %s33, 0
      %p291 = por %p289, %p290
      %s293 = sadd.s32 %s292, 1
      %p296 = scmp.eq.s32.totalorder %s27, 1
      %p297 = scmp.ne.s32.totalorder %s292, %s294
      %p298 = scmp.eq.s32.totalorder %s27, 0
      %p299 = por %p297, %p298
      %p300 = scmp.ne.s32.totalorder %s292, %s294
      %p301 = scmp.eq.s32.totalorder %s32, 1
      %p302 = por %p300, %p301
      %p303 = scmp.ne.s32.totalorder %s294, %s295
      %p304 = scmp.eq.s32.totalorder %s32, 0
      %p305 = por %p303, %p304
      %p306 = scmp.ne.s32.totalorder %s294, %s295
      %p307 = scmp.eq.s32.totalorder %s33, 1
      %p308 = por %p306, %p307
      %p310 = scmp.ne.s32.totalorder %s295, %s309
      %p311 = scmp.eq.s32.totalorder %s33, 0
      %p312 = por %p310, %p311
      %s313 = ssub.s32 %s27, %s34
      %p314 = scmp.eq.s32.totalorder %s313, 0
      %s316 = sadd.s32 %s315, 1
      %s317 = scalar_select %p314, %s315, %s316
      %p320 = pneg %p314
      %p321 = scmp.eq.s32.totalorder %s27, 1
      %p322 = por %p320, %p321
      %p323 = scmp.ne.s32.totalorder %s315, %s318
      %p324 = scmp.eq.s32.totalorder %s27, 0
      %p325 = por %p323, %p324
      %p326 = scmp.ne.s32.totalorder %s315, %s318
      %p327 = scmp.eq.s32.totalorder %s32, 1
      %p328 = por %p326, %p327
      %p329 = scmp.ne.s32.totalorder %s318, %s319
      %p330 = scmp.eq.s32.totalorder %s32, 0
      %p331 = por %p329, %p330
      %p332 = scmp.ne.s32.totalorder %s318, %s319
      %p333 = scmp.eq.s32.totalorder %s33, 1
      %p334 = por %p332, %p333
      %p336 = scmp.ne.s32.totalorder %s319, %s335
      %p337 = scmp.eq.s32.totalorder %s33, 0
      %p338 = por %p336, %p337
      %p339 = scmp.le.s32.totalorder 1, %s27
      %p340 = scmp.lt.s32.totalorder %s27, 3
      %p341 = pnand %p339, %p340
      %p342 = pneg %p341
      // Predicated region
      $region9: #{tpu_custom_call.1} parent=5 // pred_check
        _
      $region10: #{tpu_custom_call.1} parent=5 // pred_check_branch
        %344 = sbr.rel (%p341) target = $region12
      $region11: #{tpu_custom_call.1} parent=5 // pred_region
        %s345 = ssub.s32 %s27, 1
        // Predicated region
        $region13: #{tpu_custom_call.1} parent=11 // pred_check
          %p346 = pneg %p74
        $region14: #{tpu_custom_call.1} parent=11 // pred_check_branch
          %348 = sbr.rel (%p346) target = $region16
        $region15: #{tpu_custom_call.1} parent=11 // pred_region
          %s350 = ssub.s32 2048, 2048
          %351 = vsyncadd [#allocation6], %s350
          %s352 = sshll.u32 [#allocation5], 4
          %s353 = int_to_ptr.vmem [resolvable:$true] %s352
          %358 = dma.hbm_to_vmem [thread:$0]  %s1, 2048, %s353, [#allocation6], 128, 128, 8
        $region16: #{tpu_custom_call.1} parent=11 // pred_fallthru
          _
        // Predicated region
        $region17: #{tpu_custom_call.1} parent=11 // pred_check
          %p359 = pneg %p95
        $region18: #{tpu_custom_call.1} parent=11 // pred_check_branch
          %361 = sbr.rel (%p359) target = $region20
        $region19: #{tpu_custom_call.1} parent=11 // pred_region
          _
        $region20: #{tpu_custom_call.1} parent=11 // pred_fallthru
          _
        // Predicated region
        $region21: #{tpu_custom_call.1} parent=11 // pred_check
          %p362 = pneg %p116
        $region22: #{tpu_custom_call.1} parent=11 // pred_check_branch
          %364 = sbr.rel (%p362) target = $region24
        $region23: #{tpu_custom_call.1} parent=11 // pred_region
          _
        $region24: #{tpu_custom_call.1} parent=11 // pred_fallthru
          _
        // Predicated region
        $region25: #{tpu_custom_call.1} parent=11 // pred_check
          %p365 = pneg %p137
        $region26: #{tpu_custom_call.1} parent=11 // pred_check_branch
          %367 = sbr.rel (%p365) target = $region28
        $region27: #{tpu_custom_call.1} parent=11 // pred_region
          _
        $region28: #{tpu_custom_call.1} parent=11 // pred_fallthru
          _
        // Predicated region
        $region29: #{tpu_custom_call.1} parent=11 // pred_check
          %p368 = pneg %p158
        $region30: #{tpu_custom_call.1} parent=11 // pred_check_branch
          %370 = sbr.rel (%p368) target = $region32
        $region31: #{tpu_custom_call.1} parent=11 // pred_region
          %s372 = ssub.s32 4096, 4096
          %373 = vsyncadd [#allocation6], %s372
          %s374 = sshll.u32 [#allocation7], 4
          %s375 = int_to_ptr.vmem [resolvable:$true] %s374
          %380 = dma.hbm_to_vmem [thread:$0]  %s5, 4096, %s375, [#allocation6], 128, 128, 8
        $region32: #{tpu_custom_call.1} parent=11 // pred_fallthru
          _
        // Predicated region
        $region33: #{tpu_custom_call.1} parent=11 // pred_check
          %p381 = pneg %p179
        $region34: #{tpu_custom_call.1} parent=11 // pred_check_branch
          %383 = sbr.rel (%p381) target = $region36
        $region35: #{tpu_custom_call.1} parent=11 // pred_region
          _
        $region36: #{tpu_custom_call.1} parent=11 // pred_fallthru
          _
        // Predicated region
        $region37: #{tpu_custom_call.1} parent=11 // pred_check
          %p384 = pneg %p200
        $region38: #{tpu_custom_call.1} parent=11 // pred_check_branch
          %386 = sbr.rel (%p384) target = $region40
        $region39: #{tpu_custom_call.1} parent=11 // pred_region
          _
        $region40: #{tpu_custom_call.1} parent=11 // pred_fallthru
          _
        // Predicated region
        $region41: #{tpu_custom_call.1} parent=11 // pred_check
          %p387 = pneg %p221
        $region42: #{tpu_custom_call.1} parent=11 // pred_check_branch
          %389 = sbr.rel (%p387) target = $region44
        $region43: #{tpu_custom_call.1} parent=11 // pred_region
          _
        $region44: #{tpu_custom_call.1} parent=11 // pred_fallthru
          _
        // Predicated region
        $region45: #{tpu_custom_call.1} parent=11 // pred_check
          %p390 = pneg %p242
        $region46: #{tpu_custom_call.1} parent=11 // pred_check_branch
          %392 = sbr.rel (%p390) target = $region48
        $region47: #{tpu_custom_call.1} parent=11 // pred_region
          %s394 = ssub.s32 4096, 4096
          %395 = vsyncadd [#allocation9], %s394
          %s396 = sshll.u32 [#allocation8], 4
          %s397 = int_to_ptr.vmem [resolvable:$true] %s396
          %402 = dma.hbm_to_vmem [thread:$0]  %s9, 4096, %s397, [#allocation9], 128, 128, 8
        $region48: #{tpu_custom_call.1} parent=11 // pred_fallthru
          _
        // Predicated region
        $region49: #{tpu_custom_call.1} parent=11 // pred_check
          %p403 = pneg %p263
        $region50: #{tpu_custom_call.1} parent=11 // pred_check_branch
          %405 = sbr.rel (%p403) target = $region52
        $region51: #{tpu_custom_call.1} parent=11 // pred_region
          _
        $region52: #{tpu_custom_call.1} parent=11 // pred_fallthru
          _
        // Predicated region
        $region53: #{tpu_custom_call.1} parent=11 // pred_check
          %p406 = pneg %p284
        $region54: #{tpu_custom_call.1} parent=11 // pred_check_branch
          %408 = sbr.rel (%p406) target = $region56
        $region55: #{tpu_custom_call.1} parent=11 // pred_region
          %s410 = ssub.s32 2048, 2048
          %411 = vsyncadd [#allocation9], %s410
          %s412 = sshll.u32 [#allocation10], 4
          %s413 = int_to_ptr.vmem [resolvable:$true] %s412
          %418 = dma.hbm_to_vmem [thread:$0]  %s11, 2048, %s413, [#allocation9], 64, 64, 4
        $region56: #{tpu_custom_call.1} parent=11 // pred_fallthru
          _
        // Predicated region
        $region57: #{tpu_custom_call.1} parent=11 // pred_check
          %p419 = pneg %p305
        $region58: #{tpu_custom_call.1} parent=11 // pred_check_branch
          %421 = sbr.rel (%p419) target = $region60
        $region59: #{tpu_custom_call.1} parent=11 // pred_region
          _
        $region60: #{tpu_custom_call.1} parent=11 // pred_fallthru
          _
      $region12: #{tpu_custom_call.1} parent=5 // pred_fallthru
        _
      %p422 = scmp.lt.s32.totalorder %s27, 2
      // Predicated region
      $region61: #{tpu_custom_call.1} parent=5 // pred_check
        %p423 = pneg %p422
      $region62: #{tpu_custom_call.1} parent=5 // pred_check_branch
        %425 = sbr.rel (%p423) target = $region64
      $region63: #{tpu_custom_call.1} parent=5 // pred_region
        // Predicated region
        $region65: #{tpu_custom_call.1} parent=63 // pred_check
          %p426 = pneg %p47
        $region66: #{tpu_custom_call.1} parent=63 // pred_check_branch
          %428 = sbr.rel (%p426) target = $region68
        $region67: #{tpu_custom_call.1} parent=63 // pred_region
          %s429 = sand.u32 %s37, 1
          %s430 = scalar_lea.sflag [#allocation3], %s429
          %s431 = sand.u32 %s37, 1
          %s432 = smul.addr %s431, 8
          %s433 = scalar_lea.vmem [#allocation2], %s432
          %s434 = smul.u32 2, %s27
          %s436 = ssub.s32 128, 128
          %437 = vsyncadd %s430, %s436
          %s438 = smul.addr %s434, 64
          %s439 = scalar_lea.hbm %s0, %s438
          %s440 = sshll.u32 %s433, 4
          %s441 = int_to_ptr.vmem [resolvable:$true] %s440
          %446 = dma.hbm_to_vmem [thread:$0]  %s439, 128, %s441, %s430, 64, 64, 4
        $region68: #{tpu_custom_call.1} parent=63 // pred_fallthru
          _
      $region64: #{tpu_custom_call.1} parent=5 // pred_fallthru
        _
      %p447 = scmp.le.s32.totalorder 1, %s27
      %p448 = scmp.lt.s32.totalorder %s27, 3
      %p449 = pnand %p447, %p448
      %p450 = pneg %p449
      // Predicated region
      $region69: #{tpu_custom_call.1} parent=5 // pred_check
        _
      $region70: #{tpu_custom_call.1} parent=5 // pred_check_branch
        %452 = sbr.rel (%p449) target = $region72
      $region71: #{tpu_custom_call.1} parent=5 // pred_region
        %s453 = ssub.s32 %s27, 1
        %s454 = sand.u32 %s40, 1
        %s455 = scalar_lea.sflag [#allocation3], %s454
        %s456 = sand.u32 %s40, 1
        %s457 = smul.addr %s456, 8
        %s458 = scalar_lea.vmem [#allocation2], %s457
        // Predicated region
        $region73: #{tpu_custom_call.1} parent=71 // pred_check
          %p459 = pneg %p53
        $region74: #{tpu_custom_call.1} parent=71 // pred_check_branch
          %461 = sbr.rel (%p459) target = $region76
        $region75: #{tpu_custom_call.1} parent=71 // pred_region
          %462 = dma.done %s455, 128
        $region76: #{tpu_custom_call.1} parent=71 // pred_fallthru
          _
        // Predicated region
        $region77: #{tpu_custom_call.1} parent=71 // pred_check
          %p463 = pneg %p74
        $region78: #{tpu_custom_call.1} parent=71 // pred_check_branch
          %465 = sbr.rel (%p463) target = $region80
        $region79: #{tpu_custom_call.1} parent=71 // pred_region
          %466 = dma.done [#allocation6], 2048
        $region80: #{tpu_custom_call.1} parent=71 // pred_fallthru
          _
        // Predicated region
        $region81: #{tpu_custom_call.1} parent=71 // pred_check
          %p467 = pneg %p158
        $region82: #{tpu_custom_call.1} parent=71 // pred_check_branch
          %469 = sbr.rel (%p467) target = $region84
        $region83: #{tpu_custom_call.1} parent=71 // pred_region
          %470 = dma.done [#allocation6], 4096
        $region84: #{tpu_custom_call.1} parent=71 // pred_fallthru
          _
        // Predicated region
        $region85: #{tpu_custom_call.1} parent=71 // pred_check
          %p471 = pneg %p242
        $region86: #{tpu_custom_call.1} parent=71 // pred_check_branch
          %473 = sbr.rel (%p471) target = $region88
        $region87: #{tpu_custom_call.1} parent=71 // pred_region
          %474 = dma.done [#allocation9], 4096
        $region88: #{tpu_custom_call.1} parent=71 // pred_fallthru
          _
        // Predicated region
        $region89: #{tpu_custom_call.1} parent=71 // pred_check
          %p475 = pneg %p284
        $region90: #{tpu_custom_call.1} parent=71 // pred_check_branch
          %477 = sbr.rel (%p475) target = $region92
        $region91: #{tpu_custom_call.1} parent=71 // pred_region
          %478 = dma.done [#allocation9], 2048
        $region92: #{tpu_custom_call.1} parent=71 // pred_fallthru
          _
        %s479 = sand.u32 %s40, 1
        %s480 = scalar_lea.sflag [#allocation3], %s479
        %s481 = sand.u32 %s40, 1
        %s482 = smul.addr %s481, 8
        %s483 = scalar_lea.vmem [#allocation2], %s482
        %p484 = pneg %p53
        %p485 = pneg %p50
        %p486 = pneg %p74
        %p487 = pneg %p71
        %p488 = pneg %p95
        %p489 = pneg %p92
        %p490 = pneg %p116
        %p491 = pneg %p113
        %p492 = pneg %p137
        %p493 = pneg %p134
        %p494 = pneg %p158
        %p495 = pneg %p155
        %p496 = pneg %p179
        %p497 = pneg %p176
        %p498 = pneg %p200
        %p499 = pneg %p197
        %p500 = pneg %p221
        %p501 = pneg %p218
        %p502 = pneg %p242
        %p503 = pneg %p239
        %p504 = pneg %p263
        %p505 = pneg %p260
        %p506 = pneg %p284
        %p507 = pneg %p281
        %p508 = pneg %p305
        %p509 = pneg %p302
        %p510 = pneg %p331
        %p511 = pneg %p328
        %s512 = sand.u32 %s318, 1
        %s513 = scalar_lea.sflag [#allocation4], %s512
        %s514 = sand.u32 %s318, 1
        %s515 = smul.addr %s514, 16
        %s516 = scalar_lea.vmem [#allocation11], %s515
        %s517 = smul.u32 2, %s32
        %s518 = smul.u32 2, %s32
        %v520 = vld [vmem:[#allocation5] sm:$0xff]
        %v521 = vld [vmem:[#allocation5 + $0x8] sm:$0xff]
        %v522 = vld [vmem:[#allocation5 + $0x10] sm:$0xff]
        %v523 = vld [vmem:[#allocation5 + $0x18] sm:$0xff]
        %v524 = vld [vmem:[#allocation5 + $0x20] sm:$0xff]
        %v525 = vld [vmem:[#allocation5 + $0x28] sm:$0xff]
        %v526 = vld [vmem:[#allocation5 + $0x30] sm:$0xff]
        %v527 = vld [vmem:[#allocation5 + $0x38] sm:$0xff]
        %v528 = vld [vmem:[#allocation5 + $0x40] sm:$0xff]
        %v529 = vld [vmem:[#allocation5 + $0x48] sm:$0xff]
        %v530 = vld [vmem:[#allocation5 + $0x50] sm:$0xff]
        %v531 = vld [vmem:[#allocation5 + $0x58] sm:$0xff]
        %v532 = vld [vmem:[#allocation5 + $0x60] sm:$0xff]
        %v533 = vld [vmem:[#allocation5 + $0x68] sm:$0xff]
        %v534 = vld [vmem:[#allocation5 + $0x70] sm:$0xff]
        %v535 = vld [vmem:[#allocation5 + $0x78] sm:$0xff]
        %v536 = vld [vmem:[%s2] sm:$0x3]
        %v537 = vld [vmem:[%s3] sm:$0x3]
        %v538 = vld [vmem:[%s4] sm:$0x3]
        %v539 = vld [vmem:[#allocation7] sm:$0xff]
        %v540 = vld [vmem:[#allocation7 + $0x8] sm:$0xff]
        %v541 = vld [vmem:[#allocation7 + $0x10] sm:$0xff]
        %v542 = vld [vmem:[#allocation7 + $0x18] sm:$0xff]
        %v543 = vld [vmem:[#allocation7 + $0x20] sm:$0xff]
        %v544 = vld [vmem:[#allocation7 + $0x28] sm:$0xff]
        %v545 = vld [vmem:[#allocation7 + $0x30] sm:$0xff]
        %v546 = vld [vmem:[#allocation7 + $0x38] sm:$0xff]
        %v547 = vld [vmem:[#allocation7 + $0x40] sm:$0xff]
        %v548 = vld [vmem:[#allocation7 + $0x48] sm:$0xff]
        %v549 = vld [vmem:[#allocation7 + $0x50] sm:$0xff]
        %v550 = vld [vmem:[#allocation7 + $0x58] sm:$0xff]
        %v551 = vld [vmem:[#allocation7 + $0x60] sm:$0xff]
        %v552 = vld [vmem:[#allocation7 + $0x68] sm:$0xff]
        %v553 = vld [vmem:[#allocation7 + $0x70] sm:$0xff]
        %v554 = vld [vmem:[#allocation7 + $0x78] sm:$0xff]
        %v555 = vld [vmem:[#allocation7 + $0x80] sm:$0xff]
        %v556 = vld [vmem:[#allocation7 + $0x88] sm:$0xff]
        %v557 = vld [vmem:[#allocation7 + $0x90] sm:$0xff]
        %v558 = vld [vmem:[#allocation7 + $0x98] sm:$0xff]
        %v559 = vld [vmem:[#allocation7 + $0xa0] sm:$0xff]
        %v560 = vld [vmem:[#allocation7 + $0xa8] sm:$0xff]
        %v561 = vld [vmem:[#allocation7 + $0xb0] sm:$0xff]
        %v562 = vld [vmem:[#allocation7 + $0xb8] sm:$0xff]
        %v563 = vld [vmem:[#allocation7 + $0xc0] sm:$0xff]
        %v564 = vld [vmem:[#allocation7 + $0xc8] sm:$0xff]
        %v565 = vld [vmem:[#allocation7 + $0xd0] sm:$0xff]
        %v566 = vld [vmem:[#allocation7 + $0xd8] sm:$0xff]
        %v567 = vld [vmem:[#allocation7 + $0xe0] sm:$0xff]
        %v568 = vld [vmem:[#allocation7 + $0xe8] sm:$0xff]
        %v569 = vld [vmem:[#allocation7 + $0xf0] sm:$0xff]
        %v570 = vld [vmem:[#allocation7 + $0xf8] sm:$0xff]
        %v571 = vld [vmem:[%s6] sm:$0x3]
        %v572 = vld [vmem:[%s7] sm:$0x3]
        %v573 = vld [vmem:[%s8] sm:$0x3]
        %v574 = vld [vmem:[#allocation8] sm:$0xff]
        %v575 = vld [vmem:[#allocation8 + $0x8] sm:$0xff]
        %v576 = vld [vmem:[#allocation8 + $0x10] sm:$0xff]
        %v577 = vld [vmem:[#allocation8 + $0x18] sm:$0xff]
        %v578 = vld [vmem:[#allocation8 + $0x20] sm:$0xff]
        %v579 = vld [vmem:[#allocation8 + $0x28] sm:$0xff]
        %v580 = vld [vmem:[#allocation8 + $0x30] sm:$0xff]
        %v581 = vld [vmem:[#allocation8 + $0x38] sm:$0xff]
        %v582 = vld [vmem:[#allocation8 + $0x40] sm:$0xff]
        %v583 = vld [vmem:[#allocation8 + $0x48] sm:$0xff]
        %v584 = vld [vmem:[#allocation8 + $0x50] sm:$0xff]
        %v585 = vld [vmem:[#allocation8 + $0x58] sm:$0xff]
        %v586 = vld [vmem:[#allocation8 + $0x60] sm:$0xff]
        %v587 = vld [vmem:[#allocation8 + $0x68] sm:$0xff]
        %v588 = vld [vmem:[#allocation8 + $0x70] sm:$0xff]
        %v589 = vld [vmem:[#allocation8 + $0x78] sm:$0xff]
        %v590 = vld [vmem:[#allocation8 + $0x80] sm:$0xff]
        %v591 = vld [vmem:[#allocation8 + $0x88] sm:$0xff]
        %v592 = vld [vmem:[#allocation8 + $0x90] sm:$0xff]
        %v593 = vld [vmem:[#allocation8 + $0x98] sm:$0xff]
        %v594 = vld [vmem:[#allocation8 + $0xa0] sm:$0xff]
        %v595 = vld [vmem:[#allocation8 + $0xa8] sm:$0xff]
        %v596 = vld [vmem:[#allocation8 + $0xb0] sm:$0xff]
        %v597 = vld [vmem:[#allocation8 + $0xb8] sm:$0xff]
        %v598 = vld [vmem:[#allocation8 + $0xc0] sm:$0xff]
        %v599 = vld [vmem:[#allocation8 + $0xc8] sm:$0xff]
        %v600 = vld [vmem:[#allocation8 + $0xd0] sm:$0xff]
        %v601 = vld [vmem:[#allocation8 + $0xd8] sm:$0xff]
        %v602 = vld [vmem:[#allocation8 + $0xe0] sm:$0xff]
        %v603 = vld [vmem:[#allocation8 + $0xe8] sm:$0xff]
        %v604 = vld [vmem:[#allocation8 + $0xf0] sm:$0xff]
        %v605 = vld [vmem:[#allocation8 + $0xf8] sm:$0xff]
        %v606 = vld [vmem:[%s10] sm:$0x3]
        %v607 = vld [vmem:[#allocation10] sm:$0xf]
        %v608 = vld [vmem:[#allocation10 + $0x4] sm:$0xf]
        %v609 = vld [vmem:[#allocation10 + $0x8] sm:$0xf]
        %v610 = vld [vmem:[#allocation10 + $0xc] sm:$0xf]
        %v611 = vld [vmem:[#allocation10 + $0x10] sm:$0xf]
        %v612 = vld [vmem:[#allocation10 + $0x14] sm:$0xf]
        %v613 = vld [vmem:[#allocation10 + $0x18] sm:$0xf]
        %v614 = vld [vmem:[#allocation10 + $0x1c] sm:$0xf]
        %v615 = vld [vmem:[#allocation10 + $0x20] sm:$0xf]
        %v616 = vld [vmem:[#allocation10 + $0x24] sm:$0xf]
        %v617 = vld [vmem:[#allocation10 + $0x28] sm:$0xf]
        %v618 = vld [vmem:[#allocation10 + $0x2c] sm:$0xf]
        %v619 = vld [vmem:[#allocation10 + $0x30] sm:$0xf]
        %v620 = vld [vmem:[#allocation10 + $0x34] sm:$0xf]
        %v621 = vld [vmem:[#allocation10 + $0x38] sm:$0xf]
        %v622 = vld [vmem:[#allocation10 + $0x3c] sm:$0xf]
        %v623 = vld [vmem:[#allocation10 + $0x40] sm:$0xf]
        %v624 = vld [vmem:[#allocation10 + $0x44] sm:$0xf]
        %v625 = vld [vmem:[#allocation10 + $0x48] sm:$0xf]
        %v626 = vld [vmem:[#allocation10 + $0x4c] sm:$0xf]
        %v627 = vld [vmem:[#allocation10 + $0x50] sm:$0xf]
        %v628 = vld [vmem:[#allocation10 + $0x54] sm:$0xf]
        %v629 = vld [vmem:[#allocation10 + $0x58] sm:$0xf]
        %v630 = vld [vmem:[#allocation10 + $0x5c] sm:$0xf]
        %v631 = vld [vmem:[#allocation10 + $0x60] sm:$0xf]
        %v632 = vld [vmem:[#allocation10 + $0x64] sm:$0xf]
        %v633 = vld [vmem:[#allocation10 + $0x68] sm:$0xf]
        %v634 = vld [vmem:[#allocation10 + $0x6c] sm:$0xf]
        %v635 = vld [vmem:[#allocation10 + $0x70] sm:$0xf]
        %v636 = vld [vmem:[#allocation10 + $0x74] sm:$0xf]
        %v637 = vld [vmem:[#allocation10 + $0x78] sm:$0xf]
        %v638 = vld [vmem:[#allocation10 + $0x7c] sm:$0xf]
        %v639 = vld [vmem:[%s12] sm:$0x1]
        %v640 = vld [vmem:[%s458] sm:$0xf]
        %v642 = vlaneseq
        %v643 = vshrl.u32 %v642, 7
        %v644 = vsub.s32 0, %v643
        %v645 = vrot.slane %v536, %v644
        %v646 = vlaneseq
        %v647 = vshrl.u32 %v646, 7
        %v648 = vsub.s32 1, %v647
        %v649 = vrot.slane %v536, %v648
        %v668 = vunpack.c.l.b16 %v520
        %v669 = vunpack.c.h.b16 %v520
        %v670 = vunpack.c.l.b16 %v521
        %v671 = vunpack.c.h.b16 %v521
        %v672 = vunpack.c.l.b16 %v522
        %v673 = vunpack.c.h.b16 %v522
        %v674 = vunpack.c.l.b16 %v523
        %v675 = vunpack.c.h.b16 %v523
        %v676 = vunpack.c.l.b16 %v524
        %v677 = vunpack.c.h.b16 %v524
        %v678 = vunpack.c.l.b16 %v525
        %v679 = vunpack.c.h.b16 %v525
        %v680 = vunpack.c.l.b16 %v526
        %v681 = vunpack.c.h.b16 %v526
        %v682 = vunpack.c.l.b16 %v527
        %v683 = vunpack.c.h.b16 %v527
        %v684 = vunpack.c.l.b16 %v528
        %v685 = vunpack.c.h.b16 %v528
        %v686 = vunpack.c.l.b16 %v529
        %v687 = vunpack.c.h.b16 %v529
        %v688 = vunpack.c.l.b16 %v530
        %v689 = vunpack.c.h.b16 %v530
        %v690 = vunpack.c.l.b16 %v531
        %v691 = vunpack.c.h.b16 %v531
        %v692 = vunpack.c.l.b16 %v532
        %v693 = vunpack.c.h.b16 %v532
        %v694 = vunpack.c.l.b16 %v533
        %v695 = vunpack.c.h.b16 %v533
        %v696 = vunpack.c.l.b16 %v534
        %v697 = vunpack.c.h.b16 %v534
        %v698 = vunpack.c.l.b16 %v535
        %v699 = vunpack.c.h.b16 %v535
        %v700 = vpack.c.b16 %v670, %v668
        %v701 = vpack.c.b16 %v671, %v669
        %v702 = vpack.c.b16 %v674, %v672
        %v703 = vpack.c.b16 %v675, %v673
        %v704 = vpack.c.b16 %v678, %v676
        %v705 = vpack.c.b16 %v679, %v677
        %v706 = vpack.c.b16 %v682, %v680
        %v707 = vpack.c.b16 %v683, %v681
        %v708 = vpack.c.b16 %v686, %v684
        %v709 = vpack.c.b16 %v687, %v685
        %v710 = vpack.c.b16 %v690, %v688
        %v711 = vpack.c.b16 %v691, %v689
        %v712 = vpack.c.b16 %v694, %v692
        %v713 = vpack.c.b16 %v695, %v693
        %v714 = vpack.c.b16 %v698, %v696
        %v715 = vpack.c.b16 %v699, %v697
        %732 = vmatprep.subr.bf16.mxu0 %v701
        %733 = vmatpush1.bf16.msra.mxu0 %v700
        %734 = vmatprep.subr.bf16.mxu0 %v703
        %735 = vmatpush1.bf16.msra.mxu0 %v702
        %736 = vmatprep.subr.bf16.mxu0 %v705
        %737 = vmatpush1.bf16.msra.mxu0 %v704
        %738 = vmatprep.subr.bf16.mxu0 %v707
        %739 = vmatpush1.bf16.msra.mxu0 %v706
        %740 = vmatprep.subr.bf16.mxu0 %v709
        %741 = vmatpush1.bf16.msra.mxu0 %v708
        %742 = vmatprep.subr.bf16.mxu0 %v711
        %743 = vmatpush1.bf16.msra.mxu0 %v710
        %744 = vmatprep.subr.bf16.mxu0 %v713
        %745 = vmatpush1.bf16.msra.mxu0 %v712
        %746 = vmatprep.subr.bf16.mxu0 %v715
        %747 = vmatpush1.bf16.msra.mxu0 %v714
        %748 = vmatprep.subr.bf16.mxu0 0
        %749 = vmatpush1.bf16.msra.mxu0 0
        %750 = vmatprep.subr.bf16.mxu0 0
        %751 = vmatpush1.bf16.msra.mxu0 0
        %752 = vmatprep.subr.bf16.mxu0 0
        %753 = vmatpush1.bf16.msra.mxu0 0
        %754 = vmatprep.subr.bf16.mxu0 0
        %755 = vmatpush1.bf16.msra.mxu0 0
        %756 = vmatprep.subr.bf16.mxu0 0
        %757 = vmatpush1.bf16.msra.mxu0 0
        %758 = vmatprep.subr.bf16.mxu0 0
        %759 = vmatpush1.bf16.msra.mxu0 0
        %760 = vmatprep.subr.bf16.mxu0 0
        %761 = vmatpush1.bf16.msra.mxu0 0
        %762 = vmatprep.subr.bf16.mxu0 0
        %763 = vmatpush1.bf16.msra.mxu0 0
        %764 = vmatprep.mubr.bf16.mxu0 0
        %765 = vmatmul.mubr.bf16.gmra.mrb[0].mxu0 %v640
        %v766 = vpop.f32.mrb[0].mxu0
        %v767 = vadd.f32 %v645, %v766
        %v768 = vpop.f32.mrb[0].mxu0
        %v769 = vadd.f32 %v649, %v768
        %v770 = vpop.f32.mrb[0].mxu0
        %v771 = vpop.f32.mrb[0].mxu0
        %772 = vdwg.mxu0
        %v773 = vadd.f32 %v767, %v769
        %774 = vadd.xlane.f32.xlu0 %v773
        %v775 = vpop.xlane.xlu0 %774
        %v776 = vrcp.pop 256.0
        %v777 = vmul.f32 %v775, %v776
        %v778 = vmul.f32 %v767, %v767
        %v779 = vmul.f32 %v769, %v769
        %v780 = vadd.f32 %v778, %v779
        %781 = vadd.xlane.f32.xlu0 %v780
        %v782 = vpop.xlane.xlu0 %781
        %v783 = vmul.f32 %v782, %v776
        %v784 = vmul.f32 %v777, %v777
        %v785 = vsub.f32 %v783, %v784
        %v786 = vmax.f32 %v785, 0.0
        %v787 = vsub.f32 %v767, %v777
        %v788 = vsub.f32 %v769, %v777
        %v789 = vadd.f32 %v786, 1e-05
        %v790 = vrsqrt.pop %v789
        %v791 = vmul.f32 %v787, %v790
        %v792 = vmul.f32 %v788, %v790
        %v794 = vlaneseq
        %v795 = vshrl.u32 %v794, 7
        %v796 = vsub.s32 0, %v795
        %v797 = vrot.slane %v537, %v796
        %v798 = vlaneseq
        %v799 = vshrl.u32 %v798, 7
        %v800 = vsub.s32 1, %v799
        %v801 = vrot.slane %v537, %v800
        %v804 = vmul.f32 %v791, %v797
        %v805 = vmul.f32 %v792, %v801
        %v807 = vlaneseq
        %v808 = vshrl.u32 %v807, 7
        %v809 = vsub.s32 0, %v808
        %v810 = vrot.slane %v538, %v809
        %v811 = vlaneseq
        %v812 = vshrl.u32 %v811, 7
        %v813 = vsub.s32 1, %v812
        %v814 = vrot.slane %v538, %v813
        %v817 = vadd.f32 %v804, %v810
        %v818 = vadd.f32 %v805, %v814
        %v819 = vmax.f32 %v817, 0.0
        %v820 = vmax.f32 %v818, 0.0
        %v821 = vpack.c.bf16 %v819, %v819
        %v822 = vpack.c.bf16 %v820, %v820
        %v824 = vlaneseq
        %v825 = vshrl.u32 %v824, 7
        %v826 = vsub.s32 0, %v825
        %v827 = vrot.slane %v571, %v826
        %v828 = vlaneseq
        %v829 = vshrl.u32 %v828, 7
        %v830 = vsub.s32 1, %v829
        %v831 = vrot.slane %v571, %v830
        %v866 = vunpack.c.l.b16 %v539
        %v867 = vunpack.c.h.b16 %v539
        %v868 = vunpack.c.l.b16 %v540
        %v869 = vunpack.c.h.b16 %v540
        %v870 = vunpack.c.l.b16 %v541
        %v871 = vunpack.c.h.b16 %v541
        %v872 = vunpack.c.l.b16 %v542
        %v873 = vunpack.c.h.b16 %v542
        %v874 = vunpack.c.l.b16 %v543
        %v875 = vunpack.c.h.b16 %v543
        %v876 = vunpack.c.l.b16 %v544
        %v877 = vunpack.c.h.b16 %v544
        %v878 = vunpack.c.l.b16 %v545
        %v879 = vunpack.c.h.b16 %v545
        %v880 = vunpack.c.l.b16 %v546
        %v881 = vunpack.c.h.b16 %v546
        %v882 = vunpack.c.l.b16 %v547
        %v883 = vunpack.c.h.b16 %v547
        %v884 = vunpack.c.l.b16 %v548
        %v885 = vunpack.c.h.b16 %v548
        %v886 = vunpack.c.l.b16 %v549
        %v887 = vunpack.c.h.b16 %v549
        %v888 = vunpack.c.l.b16 %v550
        %v889 = vunpack.c.h.b16 %v550
        %v890 = vunpack.c.l.b16 %v551
        %v891 = vunpack.c.h.b16 %v551
        %v892 = vunpack.c.l.b16 %v552
        %v893 = vunpack.c.h.b16 %v552
        %v894 = vunpack.c.l.b16 %v553
        %v895 = vunpack.c.h.b16 %v553
        %v896 = vunpack.c.l.b16 %v554
        %v897 = vunpack.c.h.b16 %v554
        %v898 = vunpack.c.l.b16 %v555
        %v899 = vunpack.c.h.b16 %v555
        %v900 = vunpack.c.l.b16 %v556
        %v901 = vunpack.c.h.b16 %v556
        %v902 = vunpack.c.l.b16 %v557
        %v903 = vunpack.c.h.b16 %v557
        %v904 = vunpack.c.l.b16 %v558
        %v905 = vunpack.c.h.b16 %v558
        %v906 = vunpack.c.l.b16 %v559
        %v907 = vunpack.c.h.b16 %v559
        %v908 = vunpack.c.l.b16 %v560
        %v909 = vunpack.c.h.b16 %v560
        %v910 = vunpack.c.l.b16 %v561
        %v911 = vunpack.c.h.b16 %v561
        %v912 = vunpack.c.l.b16 %v562
        %v913 = vunpack.c.h.b16 %v562
        %v914 = vunpack.c.l.b16 %v563
        %v915 = vunpack.c.h.b16 %v563
        %v916 = vunpack.c.l.b16 %v564
        %v917 = vunpack.c.h.b16 %v564
        %v918 = vunpack.c.l.b16 %v565
        %v919 = vunpack.c.h.b16 %v565
        %v920 = vunpack.c.l.b16 %v566
        %v921 = vunpack.c.h.b16 %v566
        %v922 = vunpack.c.l.b16 %v567
        %v923 = vunpack.c.h.b16 %v567
        %v924 = vunpack.c.l.b16 %v568
        %v925 = vunpack.c.h.b16 %v568
        %v926 = vunpack.c.l.b16 %v569
        %v927 = vunpack.c.h.b16 %v569
        %v928 = vunpack.c.l.b16 %v570
        %v929 = vunpack.c.h.b16 %v570
        %v930 = vpack.c.b16 %v868, %v866
        %v931 = vpack.c.b16 %v869, %v867
        %v932 = vpack.c.b16 %v872, %v870
        %v933 = vpack.c.b16 %v873, %v871
        %v934 = vpack.c.b16 %v876, %v874
        %v935 = vpack.c.b16 %v877, %v875
        %v936 = vpack.c.b16 %v880, %v878
        %v937 = vpack.c.b16 %v881, %v879
        %v938 = vpack.c.b16 %v884, %v882
        %v939 = vpack.c.b16 %v885, %v883
        %v940 = vpack.c.b16 %v888, %v886
        %v941 = vpack.c.b16 %v889, %v887
        %v942 = vpack.c.b16 %v892, %v890
        %v943 = vpack.c.b16 %v893, %v891
        %v944 = vpack.c.b16 %v896, %v894
        %v945 = vpack.c.b16 %v897, %v895
        %v946 = vpack.c.b16 %v900, %v898
        %v947 = vpack.c.b16 %v901, %v899
        %v948 = vpack.c.b16 %v904, %v902
        %v949 = vpack.c.b16 %v905, %v903
        %v950 = vpack.c.b16 %v908, %v906
        %v951 = vpack.c.b16 %v909, %v907
        %v952 = vpack.c.b16 %v912, %v910
        %v953 = vpack.c.b16 %v913, %v911
        %v954 = vpack.c.b16 %v916, %v914
        %v955 = vpack.c.b16 %v917, %v915
        %v956 = vpack.c.b16 %v920, %v918
        %v957 = vpack.c.b16 %v921, %v919
        %v958 = vpack.c.b16 %v924, %v922
        %v959 = vpack.c.b16 %v925, %v923
        %v960 = vpack.c.b16 %v928, %v926
        %v961 = vpack.c.b16 %v929, %v927
        %994 = vmatprep.subr.bf16.mxu0 %v931
        %995 = vmatpush1.bf16.msra.mxu0 %v930
        %996 = vmatprep.subr.bf16.mxu0 %v933
        %997 = vmatpush1.bf16.msra.mxu0 %v932
        %998 = vmatprep.subr.bf16.mxu0 %v935
        %999 = vmatpush1.bf16.msra.mxu0 %v934
        %1000 = vmatprep.subr.bf16.mxu0 %v937
        %1001 = vmatpush1.bf16.msra.mxu0 %v936
        %1002 = vmatprep.subr.bf16.mxu0 %v939
        %1003 = vmatpush1.bf16.msra.mxu0 %v938
        %1004 = vmatprep.subr.bf16.mxu0 %v941
        %1005 = vmatpush1.bf16.msra.mxu0 %v940
        %1006 = vmatprep.subr.bf16.mxu0 %v943
        %1007 = vmatpush1.bf16.msra.mxu0 %v942
        %1008 = vmatprep.subr.bf16.mxu0 %v945
        %1009 = vmatpush1.bf16.msra.mxu0 %v944
        %1010 = vmatprep.subr.bf16.mxu0 %v947
        %1011 = vmatpush1.bf16.msra.mxu0 %v946
        %1012 = vmatprep.subr.bf16.mxu0 %v949
        %1013 = vmatpush1.bf16.msra.mxu0 %v948
        %1014 = vmatprep.subr.bf16.mxu0 %v951
        %1015 = vmatpush1.bf16.msra.mxu0 %v950
        %1016 = vmatprep.subr.bf16.mxu0 %v953
        %1017 = vmatpush1.bf16.msra.mxu0 %v952
        %1018 = vmatprep.subr.bf16.mxu0 %v955
        %1019 = vmatpush1.bf16.msra.mxu0 %v954
        %1020 = vmatprep.subr.bf16.mxu0 %v957
        %1021 = vmatpush1.bf16.msra.mxu0 %v956
        %1022 = vmatprep.subr.bf16.mxu0 %v959
        %1023 = vmatpush1.bf16.msra.mxu0 %v958
        %1024 = vmatprep.subr.bf16.mxu0 %v961
        %1025 = vmatpush1.bf16.msra.mxu0 %v960
        %1026 = vmatprep.mubr.bf16.mxu0 %v822
        %1027 = vmatmul.mubr.bf16.gmra.mrb[0].mxu0 %v821
        %v1028 = vpop.f32.mrb[0].mxu0
        %v1029 = vadd.f32 %v827, %v1028
        %v1030 = vpop.f32.mrb[0].mxu0
        %v1031 = vadd.f32 %v831, %v1030
        %v1032 = vpop.f32.mrb[0].mxu0
        %v1033 = vpop.f32.mrb[0].mxu0
        %1034 = vdwg.mxu0
        %v1035 = vadd.f32 %v1029, %v1031
        %1036 = vadd.xlane.f32.xlu0 %v1035
        %v1037 = vpop.xlane.xlu0 %1036
        %v1038 = vmul.f32 %v1037, %v776
        %v1039 = vmul.f32 %v1029, %v1029
        %v1040 = vmul.f32 %v1031, %v1031
        %v1041 = vadd.f32 %v1039, %v1040
        %1042 = vadd.xlane.f32.xlu0 %v1041
        %v1043 = vpop.xlane.xlu0 %1042
        %v1044 = vmul.f32 %v1043, %v776
        %v1045 = vmul.f32 %v1038, %v1038
        %v1046 = vsub.f32 %v1044, %v1045
        %v1047 = vmax.f32 %v1046, 0.0
        %v1048 = vsub.f32 %v1029, %v1038
        %v1049 = vsub.f32 %v1031, %v1038
        %v1050 = vadd.f32 %v1047, 1e-05
        %v1051 = vrsqrt.pop %v1050
        %v1052 = vmul.f32 %v1048, %v1051
        %v1053 = vmul.f32 %v1049, %v1051
        %v1055 = vlaneseq
        %v1056 = vshrl.u32 %v1055, 7
        %v1057 = vsub.s32 0, %v1056
        %v1058 = vrot.slane %v572, %v1057
        %v1059 = vlaneseq
        %v1060 = vshrl.u32 %v1059, 7
        %v1061 = vsub.s32 1, %v1060
        %v1062 = vrot.slane %v572, %v1061
        %v1065 = vmul.f32 %v1052, %v1058
        %v1066 = vmul.f32 %v1053, %v1062
        %v1068 = vlaneseq
        %v1069 = vshrl.u32 %v1068, 7
        %v1070 = vsub.s32 0, %v1069
        %v1071 = vrot.slane %v573, %v1070
        %v1072 = vlaneseq
        %v1073 = vshrl.u32 %v1072, 7
        %v1074 = vsub.s32 1, %v1073
        %v1075 = vrot.slane %v573, %v1074
        %v1078 = vadd.f32 %v1065, %v1071
        %v1079 = vadd.f32 %v1066, %v1075
        %v1080 = vmax.f32 %v1078, 0.0
        %v1081 = vmax.f32 %v1079, 0.0
        %v1082 = vpack.c.bf16 %v1080, %v1080
        %v1083 = vpack.c.bf16 %v1081, %v1081
        %v1085 = vlaneseq
        %v1086 = vshrl.u32 %v1085, 7
        %v1087 = vsub.s32 0, %v1086
        %v1088 = vrot.slane %v606, %v1087
        %v1089 = vlaneseq
        %v1090 = vshrl.u32 %v1089, 7
        %v1091 = vsub.s32 1, %v1090
        %v1092 = vrot.slane %v606, %v1091
        %v1127 = vunpack.c.l.b16 %v574
        %v1128 = vunpack.c.h.b16 %v574
        %v1129 = vunpack.c.l.b16 %v575
        %v1130 = vunpack.c.h.b16 %v575
        %v1131 = vunpack.c.l.b16 %v576
        %v1132 = vunpack.c.h.b16 %v576
        %v1133 = vunpack.c.l.b16 %v577
        %v1134 = vunpack.c.h.b16 %v577
        %v1135 = vunpack.c.l.b16 %v578
        %v1136 = vunpack.c.h.b16 %v578
        %v1137 = vunpack.c.l.b16 %v579
        %v1138 = vunpack.c.h.b16 %v579
        %v1139 = vunpack.c.l.b16 %v580
        %v1140 = vunpack.c.h.b16 %v580
        %v1141 = vunpack.c.l.b16 %v581
        %v1142 = vunpack.c.h.b16 %v581
        %v1143 = vunpack.c.l.b16 %v582
        %v1144 = vunpack.c.h.b16 %v582
        %v1145 = vunpack.c.l.b16 %v583
        %v1146 = vunpack.c.h.b16 %v583
        %v1147 = vunpack.c.l.b16 %v584
        %v1148 = vunpack.c.h.b16 %v584
        %v1149 = vunpack.c.l.b16 %v585
        %v1150 = vunpack.c.h.b16 %v585
        %v1151 = vunpack.c.l.b16 %v586
        %v1152 = vunpack.c.h.b16 %v586
        %v1153 = vunpack.c.l.b16 %v587
        %v1154 = vunpack.c.h.b16 %v587
        %v1155 = vunpack.c.l.b16 %v588
        %v1156 = vunpack.c.h.b16 %v588
        %v1157 = vunpack.c.l.b16 %v589
        %v1158 = vunpack.c.h.b16 %v589
        %v1159 = vunpack.c.l.b16 %v590
        %v1160 = vunpack.c.h.b16 %v590
        %v1161 = vunpack.c.l.b16 %v591
        %v1162 = vunpack.c.h.b16 %v591
        %v1163 = vunpack.c.l.b16 %v592
        %v1164 = vunpack.c.h.b16 %v592
        %v1165 = vunpack.c.l.b16 %v593
        %v1166 = vunpack.c.h.b16 %v593
        %v1167 = vunpack.c.l.b16 %v594
        %v1168 = vunpack.c.h.b16 %v594
        %v1169 = vunpack.c.l.b16 %v595
        %v1170 = vunpack.c.h.b16 %v595
        %v1171 = vunpack.c.l.b16 %v596
        %v1172 = vunpack.c.h.b16 %v596
        %v1173 = vunpack.c.l.b16 %v597
        %v1174 = vunpack.c.h.b16 %v597
        %v1175 = vunpack.c.l.b16 %v598
        %v1176 = vunpack.c.h.b16 %v598
        %v1177 = vunpack.c.l.b16 %v599
        %v1178 = vunpack.c.h.b16 %v599
        %v1179 = vunpack.c.l.b16 %v600
        %v1180 = vunpack.c.h.b16 %v600
        %v1181 = vunpack.c.l.b16 %v601
        %v1182 = vunpack.c.h.b16 %v601
        %v1183 = vunpack.c.l.b16 %v602
        %v1184 = vunpack.c.h.b16 %v602
        %v1185 = vunpack.c.l.b16 %v603
        %v1186 = vunpack.c.h.b16 %v603
        %v1187 = vunpack.c.l.b16 %v604
        %v1188 = vunpack.c.h.b16 %v604
        %v1189 = vunpack.c.l.b16 %v605
        %v1190 = vunpack.c.h.b16 %v605
        %v1191 = vpack.c.b16 %v1129, %v1127
        %v1192 = vpack.c.b16 %v1130, %v1128
        %v1193 = vpack.c.b16 %v1133, %v1131
        %v1194 = vpack.c.b16 %v1134, %v1132
        %v1195 = vpack.c.b16 %v1137, %v1135
        %v1196 = vpack.c.b16 %v1138, %v1136
        %v1197 = vpack.c.b16 %v1141, %v1139
        %v1198 = vpack.c.b16 %v1142, %v1140
        %v1199 = vpack.c.b16 %v1145, %v1143
        %v1200 = vpack.c.b16 %v1146, %v1144
        %v1201 = vpack.c.b16 %v1149, %v1147
        %v1202 = vpack.c.b16 %v1150, %v1148
        %v1203 = vpack.c.b16 %v1153, %v1151
        %v1204 = vpack.c.b16 %v1154, %v1152
        %v1205 = vpack.c.b16 %v1157, %v1155
        %v1206 = vpack.c.b16 %v1158, %v1156
        %v1207 = vpack.c.b16 %v1161, %v1159
        %v1208 = vpack.c.b16 %v1162, %v1160
        %v1209 = vpack.c.b16 %v1165, %v1163
        %v1210 = vpack.c.b16 %v1166, %v1164
        %v1211 = vpack.c.b16 %v1169, %v1167
        %v1212 = vpack.c.b16 %v1170, %v1168
        %v1213 = vpack.c.b16 %v1173, %v1171
        %v1214 = vpack.c.b16 %v1174, %v1172
        %v1215 = vpack.c.b16 %v1177, %v1175
        %v1216 = vpack.c.b16 %v1178, %v1176
        %v1217 = vpack.c.b16 %v1181, %v1179
        %v1218 = vpack.c.b16 %v1182, %v1180
        %v1219 = vpack.c.b16 %v1185, %v1183
        %v1220 = vpack.c.b16 %v1186, %v1184
        %v1221 = vpack.c.b16 %v1189, %v1187
        %v1222 = vpack.c.b16 %v1190, %v1188
        %1255 = vmatprep.subr.bf16.mxu0 %v1192
        %1256 = vmatpush1.bf16.msra.mxu0 %v1191
        %1257 = vmatprep.subr.bf16.mxu0 %v1194
        %1258 = vmatpush1.bf16.msra.mxu0 %v1193
        %1259 = vmatprep.subr.bf16.mxu0 %v1196
        %1260 = vmatpush1.bf16.msra.mxu0 %v1195
        %1261 = vmatprep.subr.bf16.mxu0 %v1198
        %1262 = vmatpush1.bf16.msra.mxu0 %v1197
        %1263 = vmatprep.subr.bf16.mxu0 %v1200
        %1264 = vmatpush1.bf16.msra.mxu0 %v1199
        %1265 = vmatprep.subr.bf16.mxu0 %v1202
        %1266 = vmatpush1.bf16.msra.mxu0 %v1201
        %1267 = vmatprep.subr.bf16.mxu0 %v1204
        %1268 = vmatpush1.bf16.msra.mxu0 %v1203
        %1269 = vmatprep.subr.bf16.mxu0 %v1206
        %1270 = vmatpush1.bf16.msra.mxu0 %v1205
        %1271 = vmatprep.subr.bf16.mxu0 %v1208
        %1272 = vmatpush1.bf16.msra.mxu0 %v1207
        %1273 = vmatprep.subr.bf16.mxu0 %v1210
        %1274 = vmatpush1.bf16.msra.mxu0 %v1209
        %1275 = vmatprep.subr.bf16.mxu0 %v1212
        %1276 = vmatpush1.bf16.msra.mxu0 %v1211
        %1277 = vmatprep.subr.bf16.mxu0 %v1214
        %1278 = vmatpush1.bf16.msra.mxu0 %v1213
        %1279 = vmatprep.subr.bf16.mxu0 %v1216
        %1280 = vmatpush1.bf16.msra.mxu0 %v1215
        %1281 = vmatprep.subr.bf16.mxu0 %v1218
        %1282 = vmatpush1.bf16.msra.mxu0 %v1217
        %1283 = vmatprep.subr.bf16.mxu0 %v1220
        %1284 = vmatpush1.bf16.msra.mxu0 %v1219
        %1285 = vmatprep.subr.bf16.mxu0 %v1222
        %1286 = vmatpush1.bf16.msra.mxu0 %v1221
        %1287 = vmatprep.mubr.bf16.mxu0 %v1083
        %1288 = vmatmul.mubr.bf16.gmra.mrb[0].mxu0 %v1082
        %v1289 = vpop.f32.mrb[0].mxu0
        %v1290 = vadd.f32 %v1088, %v1289
        %v1291 = vpop.f32.mrb[0].mxu0
        %v1292 = vadd.f32 %v1092, %v1291
        %v1293 = vpop.f32.mrb[0].mxu0
        %v1294 = vpop.f32.mrb[0].mxu0
        %1295 = vdwg.mxu0
        %v1296 = vmax.f32 %v1290, 0.0
        %v1297 = vmax.f32 %v1292, 0.0
        %v1298 = vpack.c.bf16 %v1296, %v1296
        %v1299 = vpack.c.bf16 %v1297, %v1297
        %v1301 = vlaneseq
        %v1302 = vshrl.u32 %v1301, 7
        %v1303 = vsub.s32 0, %v1302
        %v1304 = vrot.slane %v639, %v1303
        %v1338 = vunpack.c.l.b16 %v607
        %v1339 = vunpack.c.l.b16 %v608
        %v1340 = vunpack.c.l.b16 %v609
        %v1341 = vunpack.c.l.b16 %v610
        %v1342 = vunpack.c.l.b16 %v611
        %v1343 = vunpack.c.l.b16 %v612
        %v1344 = vunpack.c.l.b16 %v613
        %v1345 = vunpack.c.l.b16 %v614
        %v1346 = vunpack.c.l.b16 %v615
        %v1347 = vunpack.c.l.b16 %v616
        %v1348 = vunpack.c.l.b16 %v617
        %v1349 = vunpack.c.l.b16 %v618
        %v1350 = vunpack.c.l.b16 %v619
        %v1351 = vunpack.c.l.b16 %v620
        %v1352 = vunpack.c.l.b16 %v621
        %v1353 = vunpack.c.l.b16 %v622
        %v1354 = vunpack.c.l.b16 %v623
        %v1355 = vunpack.c.l.b16 %v624
        %v1356 = vunpack.c.l.b16 %v625
        %v1357 = vunpack.c.l.b16 %v626
        %v1358 = vunpack.c.l.b16 %v627
        %v1359 = vunpack.c.l.b16 %v628
        %v1360 = vunpack.c.l.b16 %v629
        %v1361 = vunpack.c.l.b16 %v630
        %v1362 = vunpack.c.l.b16 %v631
        %v1363 = vunpack.c.l.b16 %v632
        %v1364 = vunpack.c.l.b16 %v633
        %v1365 = vunpack.c.l.b16 %v634
        %v1366 = vunpack.c.l.b16 %v635
        %v1367 = vunpack.c.l.b16 %v636
        %v1368 = vunpack.c.l.b16 %v637
        %v1369 = vunpack.c.l.b16 %v638
        %v1370 = vpack.c.b16 %v1339, %v1338
        %v1371 = vpack.c.b16 %v1341, %v1340
        %v1372 = vpack.c.b16 %v1343, %v1342
        %v1373 = vpack.c.b16 %v1345, %v1344
        %v1374 = vpack.c.b16 %v1347, %v1346
        %v1375 = vpack.c.b16 %v1349, %v1348
        %v1376 = vpack.c.b16 %v1351, %v1350
        %v1377 = vpack.c.b16 %v1353, %v1352
        %v1378 = vpack.c.b16 %v1355, %v1354
        %v1379 = vpack.c.b16 %v1357, %v1356
        %v1380 = vpack.c.b16 %v1359, %v1358
        %v1381 = vpack.c.b16 %v1361, %v1360
        %v1382 = vpack.c.b16 %v1363, %v1362
        %v1383 = vpack.c.b16 %v1365, %v1364
        %v1384 = vpack.c.b16 %v1367, %v1366
        %v1385 = vpack.c.b16 %v1369, %v1368
        %1402 = vmatprep.subr.bf16.mxu0 0
        %1403 = vmatpush1.bf16.msra.mxu0 %v1370
        %1404 = vmatprep.subr.bf16.mxu0 0
        %1405 = vmatpush1.bf16.msra.mxu0 %v1371
        %1406 = vmatprep.subr.bf16.mxu0 0
        %1407 = vmatpush1.bf16.msra.mxu0 %v1372
        %1408 = vmatprep.subr.bf16.mxu0 0
        %1409 = vmatpush1.bf16.msra.mxu0 %v1373
        %1410 = vmatprep.subr.bf16.mxu0 0
        %1411 = vmatpush1.bf16.msra.mxu0 %v1374
        %1412 = vmatprep.subr.bf16.mxu0 0
        %1413 = vmatpush1.bf16.msra.mxu0 %v1375
        %1414 = vmatprep.subr.bf16.mxu0 0
        %1415 = vmatpush1.bf16.msra.mxu0 %v1376
        %1416 = vmatprep.subr.bf16.mxu0 0
        %1417 = vmatpush1.bf16.msra.mxu0 %v1377
        %1418 = vmatprep.subr.bf16.mxu0 0
        %1419 = vmatpush1.bf16.msra.mxu0 %v1378
        %1420 = vmatprep.subr.bf16.mxu0 0
        %1421 = vmatpush1.bf16.msra.mxu0 %v1379
        %1422 = vmatprep.subr.bf16.mxu0 0
        %1423 = vmatpush1.bf16.msra.mxu0 %v1380
        %1424 = vmatprep.subr.bf16.mxu0 0
        %1425 = vmatpush1.bf16.msra.mxu0 %v1381
        %1426 = vmatprep.subr.bf16.mxu0 0
        %1427 = vmatpush1.bf16.msra.mxu0 %v1382
        %1428 = vmatprep.subr.bf16.mxu0 0
        %1429 = vmatpush1.bf16.msra.mxu0 %v1383
        %1430 = vmatprep.subr.bf16.mxu0 0
        %1431 = vmatpush1.bf16.msra.mxu0 %v1384
        %1432 = vmatprep.subr.bf16.mxu0 0
        %1433 = vmatpush1.bf16.msra.mxu0 %v1385
        %1434 = vmatprep.mubr.bf16.mxu0 %v1299
        %1435 = vmatmul.mubr.bf16.gmra.mrb[0].mxu0 %v1298
        %v1436 = vpop.f32.mrb[0].mxu0
        %v1437 = vadd.f32 %v1304, %v1436
        %v1438 = vpop.f32.mrb[0].mxu0
        %v1439 = vpop.f32.mrb[0].mxu0
        %v1440 = vpop.f32.mrb[0].mxu0
        %1441 = vdwg.mxu0
        %1442 = vst [vmem:[%s516] sm:$0xff] %v1437
        %v1443 = vld [vmem:[%s458 + $0x4] sm:$0xf]
        %1444 = vmatprep.subr.bf16.mxu0 %v701
        %1445 = vmatpush1.bf16.msra.mxu0 %v700
        %1446 = vmatprep.subr.bf16.mxu0 %v703
        %1447 = vmatpush1.bf16.msra.mxu0 %v702
        %1448 = vmatprep.subr.bf16.mxu0 %v705
        %1449 = vmatpush1.bf16.msra.mxu0 %v704
        %1450 = vmatprep.subr.bf16.mxu0 %v707
        %1451 = vmatpush1.bf16.msra.mxu0 %v706
        %1452 = vmatprep.subr.bf16.mxu0 %v709
        %1453 = vmatpush1.bf16.msra.mxu0 %v708
        %1454 = vmatprep.subr.bf16.mxu0 %v711
        %1455 = vmatpush1.bf16.msra.mxu0 %v710
        %1456 = vmatprep.subr.bf16.mxu0 %v713
        %1457 = vmatpush1.bf16.msra.mxu0 %v712
        %1458 = vmatprep.subr.bf16.mxu0 %v715
        %1459 = vmatpush1.bf16.msra.mxu0 %v714
        %1460 = vmatprep.subr.bf16.mxu0 0
        %1461 = vmatpush1.bf16.msra.mxu0 0
        %1462 = vmatprep.subr.bf16.mxu0 0
        %1463 = vmatpush1.bf16.msra.mxu0 0
        %1464 = vmatprep.subr.bf16.mxu0 0
        %1465 = vmatpush1.bf16.msra.mxu0 0
        %1466 = vmatprep.subr.bf16.mxu0 0
        %1467 = vmatpush1.bf16.msra.mxu0 0
        %1468 = vmatprep.subr.bf16.mxu0 0
        %1469 = vmatpush1.bf16.msra.mxu0 0
        %1470 = vmatprep.subr.bf16.mxu0 0
        %1471 = vmatpush1.bf16.msra.mxu0 0
        %1472 = vmatprep.subr.bf16.mxu0 0
        %1473 = vmatpush1.bf16.msra.mxu0 0
        %1474 = vmatprep.subr.bf16.mxu0 0
        %1475 = vmatpush1.bf16.msra.mxu0 0
        %1476 = vmatprep.mubr.bf16.mxu0 0
        %1477 = vmatmul.mubr.bf16.gmra.mrb[0].mxu0 %v1443
        %v1478 = vpop.f32.mrb[0].mxu0
        %v1479 = vadd.f32 %v645, %v1478
        %v1480 = vpop.f32.mrb[0].mxu0
        %v1481 = vadd.f32 %v649, %v1480
        %v1482 = vpop.f32.mrb[0].mxu0
        %v1483 = vpop.f32.mrb[0].mxu0
        %1484 = vdwg.mxu0
        %v1485 = vadd.f32 %v1479, %v1481
        %1486 = vadd.xlane.f32.xlu0 %v1485
        %v1487 = vpop.xlane.xlu0 %1486
        %v1488 = vmul.f32 %v1487, %v776
        %v1489 = vmul.f32 %v1479, %v1479
        %v1490 = vmul.f32 %v1481, %v1481
        %v1491 = vadd.f32 %v1489, %v1490
        %1492 = vadd.xlane.f32.xlu0 %v1491
        %v1493 = vpop.xlane.xlu0 %1492
        %v1494 = vmul.f32 %v1493, %v776
        %v1495 = vmul.f32 %v1488, %v1488
        %v1496 = vsub.f32 %v1494, %v1495
        %v1497 = vmax.f32 %v1496, 0.0
        %v1498 = vsub.f32 %v1479, %v1488
        %v1499 = vsub.f32 %v1481, %v1488
        %v1500 = vadd.f32 %v1497, 1e-05
        %v1501 = vrsqrt.pop %v1500
        %v1502 = vmul.f32 %v1498, %v1501
        %v1503 = vmul.f32 %v1499, %v1501
        %v1504 = vmul.f32 %v1502, %v797
        %v1505 = vmul.f32 %v1503, %v801
        %v1506 = vadd.f32 %v1504, %v810
        %v1507 = vadd.f32 %v1505, %v814
        %v1508 = vmax.f32 %v1506, 0.0
        %v1509 = vmax.f32 %v1507, 0.0
        %v1510 = vpack.c.bf16 %v1508, %v1508
        %v1511 = vpack.c.bf16 %v1509, %v1509
        %1512 = vmatprep.subr.bf16.mxu0 %v931
        %1513 = vmatpush1.bf16.msra.mxu0 %v930
        %1514 = vmatprep.subr.bf16.mxu0 %v933
        %1515 = vmatpush1.bf16.msra.mxu0 %v932
        %1516 = vmatprep.subr.bf16.mxu0 %v935
        %1517 = vmatpush1.bf16.msra.mxu0 %v934
        %1518 = vmatprep.subr.bf16.mxu0 %v937
        %1519 = vmatpush1.bf16.msra.mxu0 %v936
        %1520 = vmatprep.subr.bf16.mxu0 %v939
        %1521 = vmatpush1.bf16.msra.mxu0 %v938
        %1522 = vmatprep.subr.bf16.mxu0 %v941
        %1523 = vmatpush1.bf16.msra.mxu0 %v940
        %1524 = vmatprep.subr.bf16.mxu0 %v943
        %1525 = vmatpush1.bf16.msra.mxu0 %v942
        %1526 = vmatprep.subr.bf16.mxu0 %v945
        %1527 = vmatpush1.bf16.msra.mxu0 %v944
        %1528 = vmatprep.subr.bf16.mxu0 %v947
        %1529 = vmatpush1.bf16.msra.mxu0 %v946
        %1530 = vmatprep.subr.bf16.mxu0 %v949
        %1531 = vmatpush1.bf16.msra.mxu0 %v948
        %1532 = vmatprep.subr.bf16.mxu0 %v951
        %1533 = vmatpush1.bf16.msra.mxu0 %v950
        %1534 = vmatprep.subr.bf16.mxu0 %v953
        %1535 = vmatpush1.bf16.msra.mxu0 %v952
        %1536 = vmatprep.subr.bf16.mxu0 %v955
        %1537 = vmatpush1.bf16.msra.mxu0 %v954
        %1538 = vmatprep.subr.bf16.mxu0 %v957
        %1539 = vmatpush1.bf16.msra.mxu0 %v956
        %1540 = vmatprep.subr.bf16.mxu0 %v959
        %1541 = vmatpush1.bf16.msra.mxu0 %v958
        %1542 = vmatprep.subr.bf16.mxu0 %v961
        %1543 = vmatpush1.bf16.msra.mxu0 %v960
        %1544 = vmatprep.mubr.bf16.mxu0 %v1511
        %1545 = vmatmul.mubr.bf16.gmra.mrb[0].mxu0 %v1510
        %v1546 = vpop.f32.mrb[0].mxu0
        %v1547 = vadd.f32 %v827, %v1546
        %v1548 = vpop.f32.mrb[0].mxu0
        %v1549 = vadd.f32 %v831, %v1548
        %v1550 = vpop.f32.mrb[0].mxu0
        %v1551 = vpop.f32.mrb[0].mxu0
        %1552 = vdwg.mxu0
        %v1553 = vadd.f32 %v1547, %v1549
        %1554 = vadd.xlane.f32.xlu0 %v1553
        %v1555 = vpop.xlane.xlu0 %1554
        %v1556 = vmul.f32 %v1555, %v776
        %v1557 = vmul.f32 %v1547, %v1547
        %v1558 = vmul.f32 %v1549, %v1549
        %v1559 = vadd.f32 %v1557, %v1558
        %1560 = vadd.xlane.f32.xlu0 %v1559
        %v1561 = vpop.xlane.xlu0 %1560
        %v1562 = vmul.f32 %v1561, %v776
        %v1563 = vmul.f32 %v1556, %v1556
        %v1564 = vsub.f32 %v1562, %v1563
        %v1565 = vmax.f32 %v1564, 0.0
        %v1566 = vsub.f32 %v1547, %v1556
        %v1567 = vsub.f32 %v1549, %v1556
        %v1568 = vadd.f32 %v1565, 1e-05
        %v1569 = vrsqrt.pop %v1568
        %v1570 = vmul.f32 %v1566, %v1569
        %v1571 = vmul.f32 %v1567, %v1569
        %v1572 = vmul.f32 %v1570, %v1058
        %v1573 = vmul.f32 %v1571, %v1062
        %v1574 = vadd.f32 %v1572, %v1071
        %v1575 = vadd.f32 %v1573, %v1075
        %v1576 = vmax.f32 %v1574, 0.0
        %v1577 = vmax.f32 %v1575, 0.0
        %v1578 = vpack.c.bf16 %v1576, %v1576
        %v1579 = vpack.c.bf16 %v1577, %v1577
        %1580 = vmatprep.subr.bf16.mxu0 %v1192
        %1581 = vmatpush1.bf16.msra.mxu0 %v1191
        %1582 = vmatprep.subr.bf16.mxu0 %v1194
        %1583 = vmatpush1.bf16.msra.mxu0 %v1193
        %1584 = vmatprep.subr.bf16.mxu0 %v1196
        %1585 = vmatpush1.bf16.msra.mxu0 %v1195
        %1586 = vmatprep.subr.bf16.mxu0 %v1198
        %1587 = vmatpush1.bf16.msra.mxu0 %v1197
        %1588 = vmatprep.subr.bf16.mxu0 %v1200
        %1589 = vmatpush1.bf16.msra.mxu0 %v1199
        %1590 = vmatprep.subr.bf16.mxu0 %v1202
        %1591 = vmatpush1.bf16.msra.mxu0 %v1201
        %1592 = vmatprep.subr.bf16.mxu0 %v1204
        %1593 = vmatpush1.bf16.msra.mxu0 %v1203
        %1594 = vmatprep.subr.bf16.mxu0 %v1206
        %1595 = vmatpush1.bf16.msra.mxu0 %v1205
        %1596 = vmatprep.subr.bf16.mxu0 %v1208
        %1597 = vmatpush1.bf16.msra.mxu0 %v1207
        %1598 = vmatprep.subr.bf16.mxu0 %v1210
        %1599 = vmatpush1.bf16.msra.mxu0 %v1209
        %1600 = vmatprep.subr.bf16.mxu0 %v1212
        %1601 = vmatpush1.bf16.msra.mxu0 %v1211
        %1602 = vmatprep.subr.bf16.mxu0 %v1214
        %1603 = vmatpush1.bf16.msra.mxu0 %v1213
        %1604 = vmatprep.subr.bf16.mxu0 %v1216
        %1605 = vmatpush1.bf16.msra.mxu0 %v1215
        %1606 = vmatprep.subr.bf16.mxu0 %v1218
        %1607 = vmatpush1.bf16.msra.mxu0 %v1217
        %1608 = vmatprep.subr.bf16.mxu0 %v1220
        %1609 = vmatpush1.bf16.msra.mxu0 %v1219
        %1610 = vmatprep.subr.bf16.mxu0 %v1222
        %1611 = vmatpush1.bf16.msra.mxu0 %v1221
        %1612 = vmatprep.mubr.bf16.mxu0 %v1579
        %1613 = vmatmul.mubr.bf16.gmra.mrb[0].mxu0 %v1578
        %v1614 = vpop.f32.mrb[0].mxu0
        %v1615 = vadd.f32 %v1088, %v1614
        %v1616 = vpop.f32.mrb[0].mxu0
        %v1617 = vadd.f32 %v1092, %v1616
        %v1618 = vpop.f32.mrb[0].mxu0
        %v1619 = vpop.f32.mrb[0].mxu0
        %1620 = vdwg.mxu0
        %v1621 = vmax.f32 %v1615, 0.0
        %v1622 = vmax.f32 %v1617, 0.0
        %v1623 = vpack.c.bf16 %v1621, %v1621
        %v1624 = vpack.c.bf16 %v1622, %v1622
        %1625 = vmatprep.subr.bf16.mxu0 0
        %1626 = vmatpush1.bf16.msra.mxu0 %v1370
        %1627 = vmatprep.subr.bf16.mxu0 0
        %1628 = vmatpush1.bf16.msra.mxu0 %v1371
        %1629 = vmatprep.subr.bf16.mxu0 0
        %1630 = vmatpush1.bf16.msra.mxu0 %v1372
        %1631 = vmatprep.subr.bf16.mxu0 0
        %1632 = vmatpush1.bf16.msra.mxu0 %v1373
        %1633 = vmatprep.subr.bf16.mxu0 0
        %1634 = vmatpush1.bf16.msra.mxu0 %v1374
        %1635 = vmatprep.subr.bf16.mxu0 0
        %1636 = vmatpush1.bf16.msra.mxu0 %v1375
        %1637 = vmatprep.subr.bf16.mxu0 0
        %1638 = vmatpush1.bf16.msra.mxu0 %v1376
        %1639 = vmatprep.subr.bf16.mxu0 0
        %1640 = vmatpush1.bf16.msra.mxu0 %v1377
        %1641 = vmatprep.subr.bf16.mxu0 0
        %1642 = vmatpush1.bf16.msra.mxu0 %v1378
        %1643 = vmatprep.subr.bf16.mxu0 0
        %1644 = vmatpush1.bf16.msra.mxu0 %v1379
        %1645 = vmatprep.subr.bf16.mxu0 0
        %1646 = vmatpush1.bf16.msra.mxu0 %v1380
        %1647 = vmatprep.subr.bf16.mxu0 0
        %1648 = vmatpush1.bf16.msra.mxu0 %v1381
        %1649 = vmatprep.subr.bf16.mxu0 0
        %1650 = vmatpush1.bf16.msra.mxu0 %v1382
        %1651 = vmatprep.subr.bf16.mxu0 0
        %1652 = vmatpush1.bf16.msra.mxu0 %v1383
        %1653 = vmatprep.subr.bf16.mxu0 0
        %1654 = vmatpush1.bf16.msra.mxu0 %v1384
        %1655 = vmatprep.subr.bf16.mxu0 0
        %1656 = vmatpush1.bf16.msra.mxu0 %v1385
        %1657 = vmatprep.mubr.bf16.mxu0 %v1624
        %1658 = vmatmul.mubr.bf16.gmra.mrb[0].mxu0 %v1623
        %v1659 = vpop.f32.mrb[0].mxu0
        %v1660 = vadd.f32 %v1304, %v1659
        %v1661 = vpop.f32.mrb[0].mxu0
        %v1662 = vpop.f32.mrb[0].mxu0
        %v1663 = vpop.f32.mrb[0].mxu0
        %1664 = vdwg.mxu0
        %1665 = vst [vmem:[%s516 + $0x8] sm:$0xff] %v1660
        %s1666 = sand.u32 %s318, 1
        %s1667 = scalar_lea.sflag [#allocation4], %s1666
        %s1668 = sand.u32 %s318, 1
        %s1669 = smul.addr %s1668, 16
        %s1670 = scalar_lea.vmem [#allocation11], %s1669
        // Predicated region
        $region93: #{tpu_custom_call.1} parent=71 // pred_check
          %p1671 = pneg %p328
        $region94: #{tpu_custom_call.1} parent=71 // pred_check_branch
          %1673 = sbr.rel (%p1671) target = $region96
        $region95: #{tpu_custom_call.1} parent=71 // pred_region
          %s1674 = smul.u32 2, %s32
          %s1676 = ssub.s32 256, 256
          %1677 = vsyncadd %s1667, %s1676
          %s1678 = smul.addr %s1674, 128
          %s1679 = scalar_lea.hbm %s13, %s1678
          %s1680 = sshll.u32 %s1670, 4
          %s1681 = int_to_ptr.vmem [resolvable:$true] %s1680
          %1686 = dma.vmem_to_hbm [thread:$0]  %s1681, 256, %s1679, %s1667, 128, 128, 8
        $region96: #{tpu_custom_call.1} parent=71 // pred_fallthru
          _
      $region72: #{tpu_custom_call.1} parent=5 // pred_fallthru
        _
      %p1687 = scmp.le.s32.totalorder 2, %s27
      // Predicated region
      $region97: #{tpu_custom_call.1} parent=5 // pred_check
        %p1688 = pneg %p1687
      $region98: #{tpu_custom_call.1} parent=5 // pred_check_branch
        %1690 = sbr.rel (%p1688) target = $region100
      $region99: #{tpu_custom_call.1} parent=5 // pred_region
        %s1691 = ssub.s32 %s27, 2
        // Predicated region
        $region101: #{tpu_custom_call.1} parent=99 // pred_check
          %p1692 = pneg %p334
        $region102: #{tpu_custom_call.1} parent=99 // pred_check_branch
          %1694 = sbr.rel (%p1692) target = $region104
        $region103: #{tpu_custom_call.1} parent=99 // pred_region
          %s1695 = sand.u32 %s319, 1
          %s1696 = scalar_lea.sflag [#allocation4], %s1695
          %s1697 = sand.u32 %s319, 1
          %s1698 = smul.addr %s1697, 16
          %s1699 = scalar_lea.vmem [#allocation11], %s1698
          %1700 = dma.done %s1696, 256
        $region104: #{tpu_custom_call.1} parent=99 // pred_fallthru
          _
      $region100: #{tpu_custom_call.1} parent=5 // pred_fallthru
        _
    $region6: #{tpu_custom_call.1} parent=1 // loop_footer
      %s31 = sadd.s32 1, %s27
    $region7: #{tpu_custom_call.1} parent=1 // loop_footer_branch
      %26 = sbr.rel target = $region3
    $region8: #{tpu_custom_call.1} parent=1 // loop_exit
      _
    %1701 = vsyncpa [#allocation3], 1
    %s1702 = scalar_lea.sflag [#allocation3], 1
    %1703 = vsyncpa %s1702, 1
    %1704 = vsyncpa [#allocation6], 1
    %1705 = vsyncpa [#allocation9], 1
    %1706 = vsyncpa [#allocation4], 1
    %s1707 = scalar_lea.sflag [#allocation4], 1
    %1708 = vsyncpa %s1707, 1

</llo_original>
